<compile_context>
chip_gen: v7x
topology: tpu7x:2x2x1
jax: 0.10.0
libtpu: 0.0.40
codegen_flags: <defaults>
</compile_context>

<pallas_src>
import functools

import jax
import jax.numpy as jnp
from jax.experimental import pallas as pl
from jax.experimental.pallas import tpu as pltpu

LAYER_DIMS = [784, 512, 256, 128, 64, 64, 32, 16, 16, 10]
TILE_B = 256  # 256 rows feeds the 256-wide MXU on v6e/v7x; fine on v5e too.


def _round_up(x, m):
    return ((x + m - 1) // m) * m


PADDED_DIMS = [_round_up(d, 128) for d in LAYER_DIMS]  # [896,512,256,128,128,...,128]


def mlp9l_kernel(x_ref, *refs):
    """refs = (w1, b1, ..., w9, b9, out_ref).

    x_ref:   (TILE_B, 896) bf16 activation tile.
    w_i:     (PADDED_in, PADDED_out) bf16, VMEM-resident across the grid.
    b_i:     (1, PADDED_out) f32.
    out_ref: (TILE_B, 128) f32 (only first 10 lanes are real logits).
    """
    out_ref = refs[-1]
    param_refs = refs[:-1]
    n_layers = len(param_refs) // 2

    h = x_ref[...]  # bf16
    for layer in range(n_layers):
        w = param_refs[2 * layer][...]          # bf16 (in_pad, out_pad)
        b = param_refs[2 * layer + 1][...]      # f32  (1, out_pad)
        z = jnp.dot(h.astype(jnp.bfloat16), w,
                    preferred_element_type=jnp.float32) + b
        h = jnp.maximum(z, 0.0)                 # ReLU after every layer (incl. last)
    out_ref[...] = h.astype(out_ref.dtype)


@jax.jit
def mlp9l_forward(x_nchw, params):
    """x_nchw: (B, 1, 28, 28) float32. params: list of (W_t (in,out) f32, b (1,out) f32)."""
    B = x_nchw.shape[0]
    x = x_nchw.reshape(B, -1)                   # == xb.view(xb.size(0), -1)
    assert x.shape[1] == LAYER_DIMS[0]

    # --- batch tiling / padding -------------------------------------------
    tile_b = min(TILE_B, _round_up(B, 8))
    b_pad = _round_up(B, tile_b)
    f_in_pad = PADDED_DIMS[0]
    f_out_pad = PADDED_DIMS[-1]

    x_p = jnp.zeros((b_pad, f_in_pad), jnp.bfloat16)
    x_p = x_p.at[:B, :LAYER_DIMS[0]].set(x.astype(jnp.bfloat16))

    # --- lane-dense, bf16 weights; f32 biases ------------------------------
    flat_params = []
    for i, (w_t, b) in enumerate(params):
        in_d, out_d = LAYER_DIMS[i], LAYER_DIMS[i + 1]
        in_p, out_p = PADDED_DIMS[i], PADDED_DIMS[i + 1]
        w_p = jnp.zeros((in_p, out_p), jnp.bfloat16)
        w_p = w_p.at[:in_d, :out_d].set(w_t.astype(jnp.bfloat16))
        b_p = jnp.zeros((1, out_p), jnp.float32)
        b_p = b_p.at[:, :out_d].set(b.astype(jnp.float32))
        flat_params += [w_p, b_p]

    # --- specs --------------------------------------------------------------
    in_specs = [pl.BlockSpec((tile_b, f_in_pad), lambda i: (i, 0))]
    for p in flat_params:
        in_specs.append(pl.BlockSpec(p.shape, lambda i: (0, 0)))  # weights resident
    out_spec = pl.BlockSpec((tile_b, f_out_pad), lambda i: (i, 0))

    grid = (b_pad // tile_b,)

    flops = 2 * b_pad * sum(PADDED_DIMS[i] * PADDED_DIMS[i + 1]
                            for i in range(len(PADDED_DIMS) - 1))
    bytes_accessed = (x_p.size * 2
                      + sum(p.size * p.dtype.itemsize for p in flat_params)
                      + b_pad * f_out_pad * 4)

    out_pad = pl.pallas_call(
        mlp9l_kernel,
        out_shape=jax.ShapeDtypeStruct((b_pad, f_out_pad), jnp.float32),
        grid=grid,
        in_specs=in_specs,
        out_specs=out_spec,
        compiler_params=pltpu.CompilerParams(
            dimension_semantics=("parallel",),
        ),
        cost_estimate=pl.CostEstimate(
            flops=flops, transcendentals=0, bytes_accessed=bytes_accessed),
    )(x_p, *flat_params)

    return out_pad[:B, :LAYER_DIMS[-1]]


def init_params(key):
    """Deterministic init mimicking nn.Linear default (uniform(-1/sqrt(fan_in), +))."""
    params = []
    for i in range(len(LAYER_DIMS) - 1):
        fan_in, fan_out = LAYER_DIMS[i], LAYER_DIMS[i + 1]
        key, kw, kb = jax.random.split(key, 3)
        bound = 1.0 / (fan_in ** 0.5)
        # stored directly as (in, out) == W.T of the PyTorch (out, in) weight
        w_t = jax.random.uniform(kw, (fan_in, fan_out), jnp.float32, -bound, bound)
        b = jax.random.uniform(kb, (1, fan_out), jnp.float32, -bound, bound)
        params.append((w_t, b))
    return params


def reference_forward(x_nchw, params):
    """Pure-JAX reference with the same bf16-matmul / f32-accumulate numerics."""
    h = x_nchw.reshape(x_nchw.shape[0], -1)
    for w_t, b in params:
        z = jnp.dot(h.astype(jnp.bfloat16), w_t.astype(jnp.bfloat16),
                    preferred_element_type=jnp.float32) + b
        h = jnp.maximum(z, 0.0)
    return h


if __name__ == "__main__":
    key = jax.random.PRNGKey(0)
    key, kx = jax.random.split(key)
    # batch=2, NCHW input (2, 1, 28, 28) -> flattens to (2, 784)
    x = jax.random.normal(kx, (2, 1, 28, 28), jnp.float32)
    params = init_params(key)

    out = mlp9l_forward(x, params)
    out = jax.block_until_ready(out)

    ref = reference_forward(x, params)
    assert out.shape == (2, 10), out.shape
    assert jnp.allclose(out, ref, atol=1e-2, rtol=1e-2), "mismatch vs reference"

    print("KERNEL_OK")
</pallas_src>

<mosaic_0001>
module attributes {stable_mosaic.version = 11 : i64} {
  func.func @mlp9l_kernel(%arg0: i32, %arg1: memref<8x896xbf16, #tpu.memory_space<vmem>>, %arg2: memref<896x512xbf16, #tpu.memory_space<vmem>>, %arg3: memref<1x512xf32, #tpu.memory_space<vmem>>, %arg4: memref<512x256xbf16, #tpu.memory_space<vmem>>, %arg5: memref<1x256xf32, #tpu.memory_space<vmem>>, %arg6: memref<256x128xbf16, #tpu.memory_space<vmem>>, %arg7: memref<1x128xf32, #tpu.memory_space<vmem>>, %arg8: memref<128x128xbf16, #tpu.memory_space<vmem>>, %arg9: memref<1x128xf32, #tpu.memory_space<vmem>>, %arg10: memref<128x128xbf16, #tpu.memory_space<vmem>>, %arg11: memref<1x128xf32, #tpu.memory_space<vmem>>, %arg12: memref<128x128xbf16, #tpu.memory_space<vmem>>, %arg13: memref<1x128xf32, #tpu.memory_space<vmem>>, %arg14: memref<128x128xbf16, #tpu.memory_space<vmem>>, %arg15: memref<1x128xf32, #tpu.memory_space<vmem>>, %arg16: memref<128x128xbf16, #tpu.memory_space<vmem>>, %arg17: memref<1x128xf32, #tpu.memory_space<vmem>>, %arg18: memref<128x128xbf16, #tpu.memory_space<vmem>>, %arg19: memref<1x128xf32, #tpu.memory_space<vmem>>, %arg20: memref<8x128xf32, #tpu.memory_space<vmem>>) attributes {dimension_semantics = [#tpu.dimension_semantics<parallel>], iteration_bounds = array<i64: 1>, scalar_prefetch = 0 : i64, scratch_operands = 0 : i64, tpu.core_type = #tpu.core_type<tc>, window_params = [{transform_indices = @transform_0, window_bounds = array<i64: 8, 896>}, {pipeline_mode = #tpu.pipeline_mode<synchronous>, transform_indices = @transform_1, window_bounds = array<i64: 896, 512>}, {pipeline_mode = #tpu.pipeline_mode<synchronous>, transform_indices = @transform_2, window_bounds = array<i64: 1, 512>}, {pipeline_mode = #tpu.pipeline_mode<synchronous>, transform_indices = @transform_3, window_bounds = array<i64: 512, 256>}, {pipeline_mode = #tpu.pipeline_mode<synchronous>, transform_indices = @transform_4, window_bounds = array<i64: 1, 256>}, {pipeline_mode = #tpu.pipeline_mode<synchronous>, transform_indices = @transform_5, window_bounds = array<i64: 256, 128>}, {pipeline_mode = #tpu.pipeline_mode<synchronous>, transform_indices = @transform_6, window_bounds = array<i64: 1, 128>}, {pipeline_mode = #tpu.pipeline_mode<synchronous>, transform_indices = @transform_7, window_bounds = array<i64: 128, 128>}, {pipeline_mode = #tpu.pipeline_mode<synchronous>, transform_indices = @transform_8, window_bounds = array<i64: 1, 128>}, {pipeline_mode = #tpu.pipeline_mode<synchronous>, transform_indices = @transform_9, window_bounds = array<i64: 128, 128>}, {pipeline_mode = #tpu.pipeline_mode<synchronous>, transform_indices = @transform_10, window_bounds = array<i64: 1, 128>}, {pipeline_mode = #tpu.pipeline_mode<synchronous>, transform_indices = @transform_11, window_bounds = array<i64: 128, 128>}, {pipeline_mode = #tpu.pipeline_mode<synchronous>, transform_indices = @transform_12, window_bounds = array<i64: 1, 128>}, {pipeline_mode = #tpu.pipeline_mode<synchronous>, transform_indices = @transform_13, window_bounds = array<i64: 128, 128>}, {pipeline_mode = #tpu.pipeline_mode<synchronous>, transform_indices = @transform_14, window_bounds = array<i64: 1, 128>}, {pipeline_mode = #tpu.pipeline_mode<synchronous>, transform_indices = @transform_15, window_bounds = array<i64: 128, 128>}, {pipeline_mode = #tpu.pipeline_mode<synchronous>, transform_indices = @transform_16, window_bounds = array<i64: 1, 128>}, {pipeline_mode = #tpu.pipeline_mode<synchronous>, transform_indices = @transform_17, window_bounds = array<i64: 128, 128>}, {pipeline_mode = #tpu.pipeline_mode<synchronous>, transform_indices = @transform_18, window_bounds = array<i64: 1, 128>}, {transform_indices = @transform_19, window_bounds = array<i64: 8, 128>}]} {
    %c0 = arith.constant 0 : index
    %c0_0 = arith.constant 0 : index
    %0 = vector.load %arg1[%c0, %c0_0] : memref<8x896xbf16, #tpu.memory_space<vmem>>, vector<8x896xbf16>
    %c0_1 = arith.constant 0 : index
    %c0_2 = arith.constant 0 : index
    %1 = vector.load %arg2[%c0_1, %c0_2] : memref<896x512xbf16, #tpu.memory_space<vmem>>, vector<896x512xbf16>
    %c0_3 = arith.constant 0 : index
    %c0_4 = arith.constant 0 : index
    %2 = vector.load %arg3[%c0_3, %c0_4] : memref<1x512xf32, #tpu.memory_space<vmem>>, vector<1x512xf32>
    %cst = arith.constant dense<0.000000e+00> : vector<8x512xf32>
    %3 = tpu.matmul %0, %1, %cst {dimension_numbers = #tpu.dot_dimension_numbers<[1], [0], [0], [1], [0, 0, 1, 1], [], []>} : vector<8x896xbf16>, vector<896x512xbf16>, vector<8x512xf32> -> vector<8x512xf32>
    %4 = vector.broadcast %2 : vector<1x512xf32> to vector<8x512xf32>
    %5 = arith.addf %3, %4 : vector<8x512xf32>
    %cst_5 = arith.constant 0.000000e+00 : f32
    %6 = vector.broadcast %cst_5 : f32 to vector<8x512xf32>
    %7 = arith.maximumf %5, %6 : vector<8x512xf32>
    %c0_6 = arith.constant 0 : index
    %c0_7 = arith.constant 0 : index
    %8 = vector.load %arg4[%c0_6, %c0_7] : memref<512x256xbf16, #tpu.memory_space<vmem>>, vector<512x256xbf16>
    %c0_8 = arith.constant 0 : index
    %c0_9 = arith.constant 0 : index
    %9 = vector.load %arg5[%c0_8, %c0_9] : memref<1x256xf32, #tpu.memory_space<vmem>>, vector<1x256xf32>
    %10 = arith.truncf %7 : vector<8x512xf32> to vector<8x512xbf16>
    %cst_10 = arith.constant dense<0.000000e+00> : vector<8x256xf32>
    %11 = tpu.matmul %10, %8, %cst_10 {dimension_numbers = #tpu.dot_dimension_numbers<[1], [0], [0], [1], [0, 0, 1, 1], [], []>} : vector<8x512xbf16>, vector<512x256xbf16>, vector<8x256xf32> -> vector<8x256xf32>
    %12 = vector.broadcast %9 : vector<1x256xf32> to vector<8x256xf32>
    %13 = arith.addf %11, %12 : vector<8x256xf32>
    %cst_11 = arith.constant 0.000000e+00 : f32
    %14 = vector.broadcast %cst_11 : f32 to vector<8x256xf32>
    %15 = arith.maximumf %13, %14 : vector<8x256xf32>
    %c0_12 = arith.constant 0 : index
    %c0_13 = arith.constant 0 : index
    %16 = vector.load %arg6[%c0_12, %c0_13] : memref<256x128xbf16, #tpu.memory_space<vmem>>, vector<256x128xbf16>
    %c0_14 = arith.constant 0 : index
    %c0_15 = arith.constant 0 : index
    %17 = vector.load %arg7[%c0_14, %c0_15] : memref<1x128xf32, #tpu.memory_space<vmem>>, vector<1x128xf32>
    %18 = arith.truncf %15 : vector<8x256xf32> to vector<8x256xbf16>
    %cst_16 = arith.constant dense<0.000000e+00> : vector<8x128xf32>
    %19 = tpu.matmul %18, %16, %cst_16 {dimension_numbers = #tpu.dot_dimension_numbers<[1], [0], [0], [1], [0, 0, 1, 1], [], []>} : vector<8x256xbf16>, vector<256x128xbf16>, vector<8x128xf32> -> vector<8x128xf32>
    %20 = vector.broadcast %17 : vector<1x128xf32> to vector<8x128xf32>
    %21 = arith.addf %19, %20 : vector<8x128xf32>
    %cst_17 = arith.constant 0.000000e+00 : f32
    %22 = vector.broadcast %cst_17 : f32 to vector<8x128xf32>
    %23 = arith.maximumf %21, %22 : vector<8x128xf32>
    %c0_18 = arith.constant 0 : index
    %c0_19 = arith.constant 0 : index
    %24 = vector.load %arg8[%c0_18, %c0_19] : memref<128x128xbf16, #tpu.memory_space<vmem>>, vector<128x128xbf16>
    %c0_20 = arith.constant 0 : index
    %c0_21 = arith.constant 0 : index
    %25 = vector.load %arg9[%c0_20, %c0_21] : memref<1x128xf32, #tpu.memory_space<vmem>>, vector<1x128xf32>
    %26 = arith.truncf %23 : vector<8x128xf32> to vector<8x128xbf16>
    %cst_22 = arith.constant dense<0.000000e+00> : vector<8x128xf32>
    %27 = tpu.matmul %26, %24, %cst_22 {dimension_numbers = #tpu.dot_dimension_numbers<[1], [0], [0], [1], [0, 0, 1, 1], [], []>} : vector<8x128xbf16>, vector<128x128xbf16>, vector<8x128xf32> -> vector<8x128xf32>
    %28 = vector.broadcast %25 : vector<1x128xf32> to vector<8x128xf32>
    %29 = arith.addf %27, %28 : vector<8x128xf32>
    %cst_23 = arith.constant 0.000000e+00 : f32
    %30 = vector.broadcast %cst_23 : f32 to vector<8x128xf32>
    %31 = arith.maximumf %29, %30 : vector<8x128xf32>
    %c0_24 = arith.constant 0 : index
    %c0_25 = arith.constant 0 : index
    %32 = vector.load %arg10[%c0_24, %c0_25] : memref<128x128xbf16, #tpu.memory_space<vmem>>, vector<128x128xbf16>
    %c0_26 = arith.constant 0 : index
    %c0_27 = arith.constant 0 : index
    %33 = vector.load %arg11[%c0_26, %c0_27] : memref<1x128xf32, #tpu.memory_space<vmem>>, vector<1x128xf32>
    %34 = arith.truncf %31 : vector<8x128xf32> to vector<8x128xbf16>
    %cst_28 = arith.constant dense<0.000000e+00> : vector<8x128xf32>
    %35 = tpu.matmul %34, %32, %cst_28 {dimension_numbers = #tpu.dot_dimension_numbers<[1], [0], [0], [1], [0, 0, 1, 1], [], []>} : vector<8x128xbf16>, vector<128x128xbf16>, vector<8x128xf32> -> vector<8x128xf32>
    %36 = vector.broadcast %33 : vector<1x128xf32> to vector<8x128xf32>
    %37 = arith.addf %35, %36 : vector<8x128xf32>
    %cst_29 = arith.constant 0.000000e+00 : f32
    %38 = vector.broadcast %cst_29 : f32 to vector<8x128xf32>
    %39 = arith.maximumf %37, %38 : vector<8x128xf32>
    %c0_30 = arith.constant 0 : index
    %c0_31 = arith.constant 0 : index
    %40 = vector.load %arg12[%c0_30, %c0_31] : memref<128x128xbf16, #tpu.memory_space<vmem>>, vector<128x128xbf16>
    %c0_32 = arith.constant 0 : index
    %c0_33 = arith.constant 0 : index
    %41 = vector.load %arg13[%c0_32, %c0_33] : memref<1x128xf32, #tpu.memory_space<vmem>>, vector<1x128xf32>
    %42 = arith.truncf %39 : vector<8x128xf32> to vector<8x128xbf16>
    %cst_34 = arith.constant dense<0.000000e+00> : vector<8x128xf32>
    %43 = tpu.matmul %42, %40, %cst_34 {dimension_numbers = #tpu.dot_dimension_numbers<[1], [0], [0], [1], [0, 0, 1, 1], [], []>} : vector<8x128xbf16>, vector<128x128xbf16>, vector<8x128xf32> -> vector<8x128xf32>
    %44 = vector.broadcast %41 : vector<1x128xf32> to vector<8x128xf32>
    %45 = arith.addf %43, %44 : vector<8x128xf32>
    %cst_35 = arith.constant 0.000000e+00 : f32
    %46 = vector.broadcast %cst_35 : f32 to vector<8x128xf32>
    %47 = arith.maximumf %45, %46 : vector<8x128xf32>
    %c0_36 = arith.constant 0 : index
    %c0_37 = arith.constant 0 : index
    %48 = vector.load %arg14[%c0_36, %c0_37] : memref<128x128xbf16, #tpu.memory_space<vmem>>, vector<128x128xbf16>
    %c0_38 = arith.constant 0 : index
    %c0_39 = arith.constant 0 : index
    %49 = vector.load %arg15[%c0_38, %c0_39] : memref<1x128xf32, #tpu.memory_space<vmem>>, vector<1x128xf32>
    %50 = arith.truncf %47 : vector<8x128xf32> to vector<8x128xbf16>
    %cst_40 = arith.constant dense<0.000000e+00> : vector<8x128xf32>
    %51 = tpu.matmul %50, %48, %cst_40 {dimension_numbers = #tpu.dot_dimension_numbers<[1], [0], [0], [1], [0, 0, 1, 1], [], []>} : vector<8x128xbf16>, vector<128x128xbf16>, vector<8x128xf32> -> vector<8x128xf32>
    %52 = vector.broadcast %49 : vector<1x128xf32> to vector<8x128xf32>
    %53 = arith.addf %51, %52 : vector<8x128xf32>
    %cst_41 = arith.constant 0.000000e+00 : f32
    %54 = vector.broadcast %cst_41 : f32 to vector<8x128xf32>
    %55 = arith.maximumf %53, %54 : vector<8x128xf32>
    %c0_42 = arith.constant 0 : index
    %c0_43 = arith.constant 0 : index
    %56 = vector.load %arg16[%c0_42, %c0_43] : memref<128x128xbf16, #tpu.memory_space<vmem>>, vector<128x128xbf16>
    %c0_44 = arith.constant 0 : index
    %c0_45 = arith.constant 0 : index
    %57 = vector.load %arg17[%c0_44, %c0_45] : memref<1x128xf32, #tpu.memory_space<vmem>>, vector<1x128xf32>
    %58 = arith.truncf %55 : vector<8x128xf32> to vector<8x128xbf16>
    %cst_46 = arith.constant dense<0.000000e+00> : vector<8x128xf32>
    %59 = tpu.matmul %58, %56, %cst_46 {dimension_numbers = #tpu.dot_dimension_numbers<[1], [0], [0], [1], [0, 0, 1, 1], [], []>} : vector<8x128xbf16>, vector<128x128xbf16>, vector<8x128xf32> -> vector<8x128xf32>
    %60 = vector.broadcast %57 : vector<1x128xf32> to vector<8x128xf32>
    %61 = arith.addf %59, %60 : vector<8x128xf32>
    %cst_47 = arith.constant 0.000000e+00 : f32
    %62 = vector.broadcast %cst_47 : f32 to vector<8x128xf32>
    %63 = arith.maximumf %61, %62 : vector<8x128xf32>
    %c0_48 = arith.constant 0 : index
    %c0_49 = arith.constant 0 : index
    %64 = vector.load %arg18[%c0_48, %c0_49] : memref<128x128xbf16, #tpu.memory_space<vmem>>, vector<128x128xbf16>
    %c0_50 = arith.constant 0 : index
    %c0_51 = arith.constant 0 : index
    %65 = vector.load %arg19[%c0_50, %c0_51] : memref<1x128xf32, #tpu.memory_space<vmem>>, vector<1x128xf32>
    %66 = arith.truncf %63 : vector<8x128xf32> to vector<8x128xbf16>
    %cst_52 = arith.constant dense<0.000000e+00> : vector<8x128xf32>
    %67 = tpu.matmul %66, %64, %cst_52 {dimension_numbers = #tpu.dot_dimension_numbers<[1], [0], [0], [1], [0, 0, 1, 1], [], []>} : vector<8x128xbf16>, vector<128x128xbf16>, vector<8x128xf32> -> vector<8x128xf32>
    %68 = vector.broadcast %65 : vector<1x128xf32> to vector<8x128xf32>
    %69 = arith.addf %67, %68 : vector<8x128xf32>
    %cst_53 = arith.constant 0.000000e+00 : f32
    %70 = vector.broadcast %cst_53 : f32 to vector<8x128xf32>
    %71 = arith.maximumf %69, %70 : vector<8x128xf32>
    %c0_54 = arith.constant 0 : index
    %c0_55 = arith.constant 0 : index
    %72 = vector.load %arg20[%c0_54, %c0_55] : memref<8x128xf32, #tpu.memory_space<vmem>>, vector<8x128xf32>
    tpu.vector_store %arg20[%c0_54, %c0_55], %71 {strides = array<i32>} : memref<8x128xf32, #tpu.memory_space<vmem>>, vector<8x128xf32>,
    return
  }
  func.func @transform_0(%arg0: i32) -> (i32, i32) {
    %c0_i32 = arith.constant 0 : i32
    %c0_i32_0 = arith.constant 0 : i32
    return %arg0, %c0_i32 : i32, i32
  }
  func.func @transform_1(%arg0: i32) -> (i32, i32) {
    %c0_i32 = arith.constant 0 : i32
    %c0_i32_0 = arith.constant 0 : i32
    %c0_i32_1 = arith.constant 0 : i32
    return %c0_i32, %c0_i32_0 : i32, i32
  }
  func.func @transform_2(%arg0: i32) -> (i32, i32) {
    %c0_i32 = arith.constant 0 : i32
    %c0_i32_0 = arith.constant 0 : i32
    %c0_i32_1 = arith.constant 0 : i32
    return %c0_i32, %c0_i32_0 : i32, i32
  }
  func.func @transform_3(%arg0: i32) -> (i32, i32) {
    %c0_i32 = arith.constant 0 : i32
    %c0_i32_0 = arith.constant 0 : i32
    %c0_i32_1 = arith.constant 0 : i32
    return %c0_i32, %c0_i32_0 : i32, i32
  }
  func.func @transform_4(%arg0: i32) -> (i32, i32) {
    %c0_i32 = arith.constant 0 : i32
    %c0_i32_0 = arith.constant 0 : i32
    %c0_i32_1 = arith.constant 0 : i32
    return %c0_i32, %c0_i32_0 : i32, i32
  }
  func.func @transform_5(%arg0: i32) -> (i32, i32) {
    %c0_i32 = arith.constant 0 : i32
    %c0_i32_0 = arith.constant 0 : i32
    %c0_i32_1 = arith.constant 0 : i32
    return %c0_i32, %c0_i32_0 : i32, i32
  }
  func.func @transform_6(%arg0: i32) -> (i32, i32) {
    %c0_i32 = arith.constant 0 : i32
    %c0_i32_0 = arith.constant 0 : i32
    %c0_i32_1 = arith.constant 0 : i32
    return %c0_i32, %c0_i32_0 : i32, i32
  }
  func.func @transform_7(%arg0: i32) -> (i32, i32) {
    %c0_i32 = arith.constant 0 : i32
    %c0_i32_0 = arith.constant 0 : i32
    %c0_i32_1 = arith.constant 0 : i32
    return %c0_i32, %c0_i32_0 : i32, i32
  }
  func.func @transform_8(%arg0: i32) -> (i32, i32) {
    %c0_i32 = arith.constant 0 : i32
    %c0_i32_0 = arith.constant 0 : i32
    %c0_i32_1 = arith.constant 0 : i32
    return %c0_i32, %c0_i32_0 : i32, i32
  }
  func.func @transform_9(%arg0: i32) -> (i32, i32) {
    %c0_i32 = arith.constant 0 : i32
    %c0_i32_0 = arith.constant 0 : i32
    %c0_i32_1 = arith.constant 0 : i32
    return %c0_i32, %c0_i32_0 : i32, i32
  }
  func.func @transform_10(%arg0: i32) -> (i32, i32) {
    %c0_i32 = arith.constant 0 : i32
    %c0_i32_0 = arith.constant 0 : i32
    %c0_i32_1 = arith.constant 0 : i32
    return %c0_i32, %c0_i32_0 : i32, i32
  }
  func.func @transform_11(%arg0: i32) -> (i32, i32) {
    %c0_i32 = arith.constant 0 : i32
    %c0_i32_0 = arith.constant 0 : i32
    %c0_i32_1 = arith.constant 0 : i32
    return %c0_i32, %c0_i32_0 : i32, i32
  }
  func.func @transform_12(%arg0: i32) -> (i32, i32) {
    %c0_i32 = arith.constant 0 : i32
    %c0_i32_0 = arith.constant 0 : i32
    %c0_i32_1 = arith.constant 0 : i32
    return %c0_i32, %c0_i32_0 : i32, i32
  }
  func.func @transform_13(%arg0: i32) -> (i32, i32) {
    %c0_i32 = arith.constant 0 : i32
    %c0_i32_0 = arith.constant 0 : i32
    %c0_i32_1 = arith.constant 0 : i32
    return %c0_i32, %c0_i32_0 : i32, i32
  }
  func.func @transform_14(%arg0: i32) -> (i32, i32) {
    %c0_i32 = arith.constant 0 : i32
    %c0_i32_0 = arith.constant 0 : i32
    %c0_i32_1 = arith.constant 0 : i32
    return %c0_i32, %c0_i32_0 : i32, i32
  }
  func.func @transform_15(%arg0: i32) -> (i32, i32) {
    %c0_i32 = arith.constant 0 : i32
    %c0_i32_0 = arith.constant 0 : i32
    %c0_i32_1 = arith.constant 0 : i32
    return %c0_i32, %c0_i32_0 : i32, i32
  }
  func.func @transform_16(%arg0: i32) -> (i32, i32) {
    %c0_i32 = arith.constant 0 : i32
    %c0_i32_0 = arith.constant 0 : i32
    %c0_i32_1 = arith.constant 0 : i32
    return %c0_i32, %c0_i32_0 : i32, i32
  }
  func.func @transform_17(%arg0: i32) -> (i32, i32) {
    %c0_i32 = arith.constant 0 : i32
    %c0_i32_0 = arith.constant 0 : i32
    %c0_i32_1 = arith.constant 0 : i32
    return %c0_i32, %c0_i32_0 : i32, i32
  }
  func.func @transform_18(%arg0: i32) -> (i32, i32) {
    %c0_i32 = arith.constant 0 : i32
    %c0_i32_0 = arith.constant 0 : i32
    %c0_i32_1 = arith.constant 0 : i32
    return %c0_i32, %c0_i32_0 : i32, i32
  }
  func.func @transform_19(%arg0: i32) -> (i32, i32) {
    %c0_i32 = arith.constant 0 : i32
    %c0_i32_0 = arith.constant 0 : i32
    return %arg0, %c0_i32 : i32, i32
  }
}

</mosaic_0001>

<llo_original>
// kernel: mlp9l_forward.1
$region0: #{mlp9l_forward.1}
  #allocation0 [shape = 'u32[]', space=smem, size = 0x4, offset = 0x4, fixed_abs, tag = 'smem constant byte address 0x4 - core index']
  #allocation1 [shape = 'u32[144,128]{1,0:T(1,128)}', space=vmem, size = 0x12000, scoped, tag = 'internal scratch']
  %s0 = inlined_call_operand.vmem [shape: bf16[8,896], index: 0, kind: input, shape index: {}]
  %s1 = inlined_call_operand.vmem [shape: bf16[896,512], index: 1, kind: input, shape index: {}]
  %s2 = inlined_call_operand.vmem [shape: f32[1,512], index: 2, kind: input, shape index: {}]
  %s3 = inlined_call_operand.vmem [shape: bf16[512,256], index: 3, kind: input, shape index: {}]
  %s4 = inlined_call_operand.vmem [shape: f32[1,256], index: 4, kind: input, shape index: {}]
  %s5 = inlined_call_operand.vmem [shape: bf16[256,128], index: 5, kind: input, shape index: {}]
  %s6 = inlined_call_operand.vmem [shape: f32[1,128], index: 6, kind: input, shape index: {}]
  %s7 = inlined_call_operand.vmem [shape: bf16[128,128], index: 7, kind: input, shape index: {}]
  %s8 = inlined_call_operand.vmem [shape: f32[1,128], index: 8, kind: input, shape index: {}]
  %s9 = inlined_call_operand.vmem [shape: bf16[128,128], index: 9, kind: input, shape index: {}]
  %s10 = inlined_call_operand.vmem [shape: f32[1,128], index: 10, kind: input, shape index: {}]
  %s11 = inlined_call_operand.vmem [shape: bf16[128,128], index: 11, kind: input, shape index: {}]
  %s12 = inlined_call_operand.vmem [shape: f32[1,128], index: 12, kind: input, shape index: {}]
  %s13 = inlined_call_operand.vmem [shape: bf16[128,128], index: 13, kind: input, shape index: {}]
  %s14 = inlined_call_operand.vmem [shape: f32[1,128], index: 14, kind: input, shape index: {}]
  %s15 = inlined_call_operand.vmem [shape: bf16[128,128], index: 15, kind: input, shape index: {}]
  %s16 = inlined_call_operand.vmem [shape: f32[1,128], index: 16, kind: input, shape index: {}]
  %s17 = inlined_call_operand.vmem [shape: bf16[128,128], index: 17, kind: input, shape index: {}]
  %s18 = inlined_call_operand.vmem [shape: f32[1,128], index: 18, kind: input, shape index: {}]
  %s19 = inlined_call_operand.vmem [shape: f32[8,128], index: 19, kind: output, shape index: {}]
  %s20 = sld [smem:[#allocation0]]
  $region86: #{mlp9l_forward.1} parent=0
    _
  %s22 = ssub.s32 1, %s20
  %s23 = scalar_select 0, %s22, %s20
  // Predicated region
  $region2: #{mlp9l_forward.1} parent=0 // pred_check
    _
  $region3: #{mlp9l_forward.1} parent=0 // pred_check_branch
    %25 = sbr.rel (0) target = $region5
  $region4: #{mlp9l_forward.1} parent=0 // pred_region
    _
  $region5: #{mlp9l_forward.1} parent=0 // pred_fallthru
    _
  // Predicated region
  $region6: #{mlp9l_forward.1} parent=0 // pred_check
    _
  $region7: #{mlp9l_forward.1} parent=0 // pred_check_branch
    %27 = sbr.rel (0) target = $region9
  $region8: #{mlp9l_forward.1} parent=0 // pred_region
    _
  $region9: #{mlp9l_forward.1} parent=0 // pred_fallthru
    _
  // Predicated region
  $region10: #{mlp9l_forward.1} parent=0 // pred_check
    _
  $region11: #{mlp9l_forward.1} parent=0 // pred_check_branch
    %29 = sbr.rel (0) target = $region13
  $region12: #{mlp9l_forward.1} parent=0 // pred_region
    _
  $region13: #{mlp9l_forward.1} parent=0 // pred_fallthru
    _
  // Predicated region
  $region14: #{mlp9l_forward.1} parent=0 // pred_check
    _
  $region15: #{mlp9l_forward.1} parent=0 // pred_check_branch
    %31 = sbr.rel (0) target = $region17
  $region16: #{mlp9l_forward.1} parent=0 // pred_region
    _
  $region17: #{mlp9l_forward.1} parent=0 // pred_fallthru
    _
  // Predicated region
  $region18: #{mlp9l_forward.1} parent=0 // pred_check
    _
  $region19: #{mlp9l_forward.1} parent=0 // pred_check_branch
    %33 = sbr.rel (0) target = $region21
  $region20: #{mlp9l_forward.1} parent=0 // pred_region
    _
  $region21: #{mlp9l_forward.1} parent=0 // pred_fallthru
    _
  // Predicated region
  $region22: #{mlp9l_forward.1} parent=0 // pred_check
    _
  $region23: #{mlp9l_forward.1} parent=0 // pred_check_branch
    %35 = sbr.rel (0) target = $region25
  $region24: #{mlp9l_forward.1} parent=0 // pred_region
    _
  $region25: #{mlp9l_forward.1} parent=0 // pred_fallthru
    _
  // Predicated region
  $region26: #{mlp9l_forward.1} parent=0 // pred_check
    _
  $region27: #{mlp9l_forward.1} parent=0 // pred_check_branch
    %37 = sbr.rel (0) target = $region29
  $region28: #{mlp9l_forward.1} parent=0 // pred_region
    _
  $region29: #{mlp9l_forward.1} parent=0 // pred_fallthru
    _
  // Predicated region
  $region30: #{mlp9l_forward.1} parent=0 // pred_check
    _
  $region31: #{mlp9l_forward.1} parent=0 // pred_check_branch
    %39 = sbr.rel (0) target = $region33
  $region32: #{mlp9l_forward.1} parent=0 // pred_region
    _
  $region33: #{mlp9l_forward.1} parent=0 // pred_fallthru
    _
  // Predicated region
  $region34: #{mlp9l_forward.1} parent=0 // pred_check
    _
  $region35: #{mlp9l_forward.1} parent=0 // pred_check_branch
    %41 = sbr.rel (0) target = $region37
  $region36: #{mlp9l_forward.1} parent=0 // pred_region
    _
  $region37: #{mlp9l_forward.1} parent=0 // pred_fallthru
    _
  // Predicated region
  $region38: #{mlp9l_forward.1} parent=0 // pred_check
    _
  $region39: #{mlp9l_forward.1} parent=0 // pred_check_branch
    %43 = sbr.rel (0) target = $region41
  $region40: #{mlp9l_forward.1} parent=0 // pred_region
    _
  $region41: #{mlp9l_forward.1} parent=0 // pred_fallthru
    _
  // Predicated region
  $region42: #{mlp9l_forward.1} parent=0 // pred_check
    _
  $region43: #{mlp9l_forward.1} parent=0 // pred_check_branch
    %45 = sbr.rel (0) target = $region45
  $region44: #{mlp9l_forward.1} parent=0 // pred_region
    _
  $region45: #{mlp9l_forward.1} parent=0 // pred_fallthru
    _
  // Predicated region
  $region46: #{mlp9l_forward.1} parent=0 // pred_check
    _
  $region47: #{mlp9l_forward.1} parent=0 // pred_check_branch
    %47 = sbr.rel (0) target = $region49
  $region48: #{mlp9l_forward.1} parent=0 // pred_region
    _
  $region49: #{mlp9l_forward.1} parent=0 // pred_fallthru
    _
  // Predicated region
  $region50: #{mlp9l_forward.1} parent=0 // pred_check
    _
  $region51: #{mlp9l_forward.1} parent=0 // pred_check_branch
    %49 = sbr.rel (0) target = $region53
  $region52: #{mlp9l_forward.1} parent=0 // pred_region
    _
  $region53: #{mlp9l_forward.1} parent=0 // pred_fallthru
    _
  // Predicated region
  $region54: #{mlp9l_forward.1} parent=0 // pred_check
    _
  $region55: #{mlp9l_forward.1} parent=0 // pred_check_branch
    %51 = sbr.rel (0) target = $region57
  $region56: #{mlp9l_forward.1} parent=0 // pred_region
    _
  $region57: #{mlp9l_forward.1} parent=0 // pred_fallthru
    _
  // Predicated region
  $region58: #{mlp9l_forward.1} parent=0 // pred_check
    _
  $region59: #{mlp9l_forward.1} parent=0 // pred_check_branch
    %53 = sbr.rel (0) target = $region61
  $region60: #{mlp9l_forward.1} parent=0 // pred_region
    _
  $region61: #{mlp9l_forward.1} parent=0 // pred_fallthru
    _
  // Predicated region
  $region62: #{mlp9l_forward.1} parent=0 // pred_check
    _
  $region63: #{mlp9l_forward.1} parent=0 // pred_check_branch
    %55 = sbr.rel (0) target = $region65
  $region64: #{mlp9l_forward.1} parent=0 // pred_region
    _
  $region65: #{mlp9l_forward.1} parent=0 // pred_fallthru
    _
  // Predicated region
  $region66: #{mlp9l_forward.1} parent=0 // pred_check
    _
  $region67: #{mlp9l_forward.1} parent=0 // pred_check_branch
    %57 = sbr.rel (0) target = $region69
  $region68: #{mlp9l_forward.1} parent=0 // pred_region
    _
  $region69: #{mlp9l_forward.1} parent=0 // pred_fallthru
    _
  // Predicated region
  $region70: #{mlp9l_forward.1} parent=0 // pred_check
    _
  $region71: #{mlp9l_forward.1} parent=0 // pred_check_branch
    %59 = sbr.rel (0) target = $region73
  $region72: #{mlp9l_forward.1} parent=0 // pred_region
    _
  $region73: #{mlp9l_forward.1} parent=0 // pred_fallthru
    _
  // Predicated region
  $region74: #{mlp9l_forward.1} parent=0 // pred_check
    _
  $region75: #{mlp9l_forward.1} parent=0 // pred_check_branch
    %61 = sbr.rel (0) target = $region77
  $region76: #{mlp9l_forward.1} parent=0 // pred_region
    _
  $region77: #{mlp9l_forward.1} parent=0 // pred_fallthru
    _
  %v63 = vld [vmem:[%s0] sm:$0xff]
  %v64 = vld [vmem:[%s0 + $0x8] sm:$0xff]
  %v65 = vld [vmem:[%s0 + $0x10] sm:$0xff]
  %v66 = vld [vmem:[%s0 + $0x18] sm:$0xf]
  %v67 = vld [vmem:[%s1] sm:$0xff]
  %v68 = vld [vmem:[%s1 + $0x8] sm:$0xff]
  %v69 = vld [vmem:[%s1 + $0x10] sm:$0xff]
  %v70 = vld [vmem:[%s1 + $0x18] sm:$0xff]
  %v71 = vld [vmem:[%s1 + $0x20] sm:$0xff]
  %v72 = vld [vmem:[%s1 + $0x28] sm:$0xff]
  %v73 = vld [vmem:[%s1 + $0x30] sm:$0xff]
  %v74 = vld [vmem:[%s1 + $0x38] sm:$0xff]
  %v75 = vld [vmem:[%s1 + $0x40] sm:$0xff]
  %v76 = vld [vmem:[%s1 + $0x48] sm:$0xff]
  %v77 = vld [vmem:[%s1 + $0x50] sm:$0xff]
  %v78 = vld [vmem:[%s1 + $0x58] sm:$0xff]
  %v79 = vld [vmem:[%s1 + $0x60] sm:$0xff]
  %v80 = vld [vmem:[%s1 + $0x68] sm:$0xff]
  %v81 = vld [vmem:[%s1 + $0x70] sm:$0xff]
  %v82 = vld [vmem:[%s1 + $0x78] sm:$0xff]
  %v83 = vld [vmem:[%s1 + $0x80] sm:$0xff]
  %v84 = vld [vmem:[%s1 + $0x88] sm:$0xff]
  %v85 = vld [vmem:[%s1 + $0x90] sm:$0xff]
  %v86 = vld [vmem:[%s1 + $0x98] sm:$0xff]
  %v87 = vld [vmem:[%s1 + $0xa0] sm:$0xff]
  %v88 = vld [vmem:[%s1 + $0xa8] sm:$0xff]
  %v89 = vld [vmem:[%s1 + $0xb0] sm:$0xff]
  %v90 = vld [vmem:[%s1 + $0xb8] sm:$0xff]
  %v91 = vld [vmem:[%s1 + $0xc0] sm:$0xff]
  %v92 = vld [vmem:[%s1 + $0xc8] sm:$0xff]
  %v93 = vld [vmem:[%s1 + $0xd0] sm:$0xff]
  %v94 = vld [vmem:[%s1 + $0xd8] sm:$0xff]
  %v95 = vld [vmem:[%s1 + $0xe0] sm:$0xff]
  %v96 = vld [vmem:[%s1 + $0xe8] sm:$0xff]
  %v97 = vld [vmem:[%s1 + $0xf0] sm:$0xff]
  %v98 = vld [vmem:[%s1 + $0xf8] sm:$0xff]
  %v99 = vld [vmem:[%s1 + $0x100] sm:$0xff]
  %v100 = vld [vmem:[%s1 + $0x108] sm:$0xff]
  %v101 = vld [vmem:[%s1 + $0x110] sm:$0xff]
  %v102 = vld [vmem:[%s1 + $0x118] sm:$0xff]
  %v103 = vld [vmem:[%s1 + $0x120] sm:$0xff]
  %v104 = vld [vmem:[%s1 + $0x128] sm:$0xff]
  %v105 = vld [vmem:[%s1 + $0x130] sm:$0xff]
  %v106 = vld [vmem:[%s1 + $0x138] sm:$0xff]
  %v107 = vld [vmem:[%s1 + $0x140] sm:$0xff]
  %v108 = vld [vmem:[%s1 + $0x148] sm:$0xff]
  %v109 = vld [vmem:[%s1 + $0x150] sm:$0xff]
  %v110 = vld [vmem:[%s1 + $0x158] sm:$0xff]
  %v111 = vld [vmem:[%s1 + $0x160] sm:$0xff]
  %v112 = vld [vmem:[%s1 + $0x168] sm:$0xff]
  %v113 = vld [vmem:[%s1 + $0x170] sm:$0xff]
  %v114 = vld [vmem:[%s1 + $0x178] sm:$0xff]
  %v115 = vld [vmem:[%s1 + $0x180] sm:$0xff]
  %v116 = vld [vmem:[%s1 + $0x188] sm:$0xff]
  %v117 = vld [vmem:[%s1 + $0x190] sm:$0xff]
  %v118 = vld [vmem:[%s1 + $0x198] sm:$0xff]
  %v119 = vld [vmem:[%s1 + $0x1a0] sm:$0xff]
  %v120 = vld [vmem:[%s1 + $0x1a8] sm:$0xff]
  %v121 = vld [vmem:[%s1 + $0x1b0] sm:$0xff]
  %v122 = vld [vmem:[%s1 + $0x1b8] sm:$0xff]
  %v123 = vld [vmem:[%s1 + $0x1c0] sm:$0xff]
  %v124 = vld [vmem:[%s1 + $0x1c8] sm:$0xff]
  %v125 = vld [vmem:[%s1 + $0x1d0] sm:$0xff]
  %v126 = vld [vmem:[%s1 + $0x1d8] sm:$0xff]
  %v127 = vld [vmem:[%s1 + $0x1e0] sm:$0xff]
  %v128 = vld [vmem:[%s1 + $0x1e8] sm:$0xff]
  %v129 = vld [vmem:[%s1 + $0x1f0] sm:$0xff]
  %v130 = vld [vmem:[%s1 + $0x1f8] sm:$0xff]
  %v131 = vld [vmem:[%s1 + $0x200] sm:$0xff]
  %v132 = vld [vmem:[%s1 + $0x208] sm:$0xff]
  %v133 = vld [vmem:[%s1 + $0x210] sm:$0xff]
  %v134 = vld [vmem:[%s1 + $0x218] sm:$0xff]
  %v135 = vld [vmem:[%s1 + $0x220] sm:$0xff]
  %v136 = vld [vmem:[%s1 + $0x228] sm:$0xff]
  %v137 = vld [vmem:[%s1 + $0x230] sm:$0xff]
  %v138 = vld [vmem:[%s1 + $0x238] sm:$0xff]
  %v139 = vld [vmem:[%s1 + $0x240] sm:$0xff]
  %v140 = vld [vmem:[%s1 + $0x248] sm:$0xff]
  %v141 = vld [vmem:[%s1 + $0x250] sm:$0xff]
  %v142 = vld [vmem:[%s1 + $0x258] sm:$0xff]
  %v143 = vld [vmem:[%s1 + $0x260] sm:$0xff]
  %v144 = vld [vmem:[%s1 + $0x268] sm:$0xff]
  %v145 = vld [vmem:[%s1 + $0x270] sm:$0xff]
  %v146 = vld [vmem:[%s1 + $0x278] sm:$0xff]
  %v147 = vld [vmem:[%s1 + $0x280] sm:$0xff]
  %v148 = vld [vmem:[%s1 + $0x288] sm:$0xff]
  %v149 = vld [vmem:[%s1 + $0x290] sm:$0xff]
  %v150 = vld [vmem:[%s1 + $0x298] sm:$0xff]
  %v151 = vld [vmem:[%s1 + $0x2a0] sm:$0xff]
  %v152 = vld [vmem:[%s1 + $0x2a8] sm:$0xff]
  %v153 = vld [vmem:[%s1 + $0x2b0] sm:$0xff]
  %v154 = vld [vmem:[%s1 + $0x2b8] sm:$0xff]
  %v155 = vld [vmem:[%s1 + $0x2c0] sm:$0xff]
  %v156 = vld [vmem:[%s1 + $0x2c8] sm:$0xff]
  %v157 = vld [vmem:[%s1 + $0x2d0] sm:$0xff]
  %v158 = vld [vmem:[%s1 + $0x2d8] sm:$0xff]
  %v159 = vld [vmem:[%s1 + $0x2e0] sm:$0xff]
  %v160 = vld [vmem:[%s1 + $0x2e8] sm:$0xff]
  %v161 = vld [vmem:[%s1 + $0x2f0] sm:$0xff]
  %v162 = vld [vmem:[%s1 + $0x2f8] sm:$0xff]
  %v163 = vld [vmem:[%s1 + $0x300] sm:$0xff]
  %v164 = vld [vmem:[%s1 + $0x308] sm:$0xff]
  %v165 = vld [vmem:[%s1 + $0x310] sm:$0xff]
  %v166 = vld [vmem:[%s1 + $0x318] sm:$0xff]
  %v167 = vld [vmem:[%s1 + $0x320] sm:$0xff]
  %v168 = vld [vmem:[%s1 + $0x328] sm:$0xff]
  %v169 = vld [vmem:[%s1 + $0x330] sm:$0xff]
  %v170 = vld [vmem:[%s1 + $0x338] sm:$0xff]
  %v171 = vld [vmem:[%s1 + $0x340] sm:$0xff]
  %v172 = vld [vmem:[%s1 + $0x348] sm:$0xff]
  %v173 = vld [vmem:[%s1 + $0x350] sm:$0xff]
  %v174 = vld [vmem:[%s1 + $0x358] sm:$0xff]
  %v175 = vld [vmem:[%s1 + $0x360] sm:$0xff]
  %v176 = vld [vmem:[%s1 + $0x368] sm:$0xff]
  %v177 = vld [vmem:[%s1 + $0x370] sm:$0xff]
  %v178 = vld [vmem:[%s1 + $0x378] sm:$0xff]
  %v179 = vld [vmem:[%s1 + $0x380] sm:$0xff]
  %v180 = vld [vmem:[%s1 + $0x388] sm:$0xff]
  %v181 = vld [vmem:[%s1 + $0x390] sm:$0xff]
  %v182 = vld [vmem:[%s1 + $0x398] sm:$0xff]
  %v183 = vld [vmem:[%s1 + $0x3a0] sm:$0xff]
  %v184 = vld [vmem:[%s1 + $0x3a8] sm:$0xff]
  %v185 = vld [vmem:[%s1 + $0x3b0] sm:$0xff]
  %v186 = vld [vmem:[%s1 + $0x3b8] sm:$0xff]
  %v187 = vld [vmem:[%s1 + $0x3c0] sm:$0xff]
  %v188 = vld [vmem:[%s1 + $0x3c8] sm:$0xff]
  %v189 = vld [vmem:[%s1 + $0x3d0] sm:$0xff]
  %v190 = vld [vmem:[%s1 + $0x3d8] sm:$0xff]
  %v191 = vld [vmem:[%s1 + $0x3e0] sm:$0xff]
  %v192 = vld [vmem:[%s1 + $0x3e8] sm:$0xff]
  %v193 = vld [vmem:[%s1 + $0x3f0] sm:$0xff]
  %v194 = vld [vmem:[%s1 + $0x3f8] sm:$0xff]
  %v195 = vld [vmem:[%s1 + $0x400] sm:$0xff]
  %v196 = vld [vmem:[%s1 + $0x408] sm:$0xff]
  %v197 = vld [vmem:[%s1 + $0x410] sm:$0xff]
  %v198 = vld [vmem:[%s1 + $0x418] sm:$0xff]
  %v199 = vld [vmem:[%s1 + $0x420] sm:$0xff]
  %v200 = vld [vmem:[%s1 + $0x428] sm:$0xff]
  %v201 = vld [vmem:[%s1 + $0x430] sm:$0xff]
  %v202 = vld [vmem:[%s1 + $0x438] sm:$0xff]
  %v203 = vld [vmem:[%s1 + $0x440] sm:$0xff]
  %v204 = vld [vmem:[%s1 + $0x448] sm:$0xff]
  %v205 = vld [vmem:[%s1 + $0x450] sm:$0xff]
  %v206 = vld [vmem:[%s1 + $0x458] sm:$0xff]
  %v207 = vld [vmem:[%s1 + $0x460] sm:$0xff]
  %v208 = vld [vmem:[%s1 + $0x468] sm:$0xff]
  %v209 = vld [vmem:[%s1 + $0x470] sm:$0xff]
  %v210 = vld [vmem:[%s1 + $0x478] sm:$0xff]
  %v211 = vld [vmem:[%s1 + $0x480] sm:$0xff]
  %v212 = vld [vmem:[%s1 + $0x488] sm:$0xff]
  %v213 = vld [vmem:[%s1 + $0x490] sm:$0xff]
  %v214 = vld [vmem:[%s1 + $0x498] sm:$0xff]
  %v215 = vld [vmem:[%s1 + $0x4a0] sm:$0xff]
  %v216 = vld [vmem:[%s1 + $0x4a8] sm:$0xff]
  %v217 = vld [vmem:[%s1 + $0x4b0] sm:$0xff]
  %v218 = vld [vmem:[%s1 + $0x4b8] sm:$0xff]
  %v219 = vld [vmem:[%s1 + $0x4c0] sm:$0xff]
  %v220 = vld [vmem:[%s1 + $0x4c8] sm:$0xff]
  %v221 = vld [vmem:[%s1 + $0x4d0] sm:$0xff]
  %v222 = vld [vmem:[%s1 + $0x4d8] sm:$0xff]
  %v223 = vld [vmem:[%s1 + $0x4e0] sm:$0xff]
  %v224 = vld [vmem:[%s1 + $0x4e8] sm:$0xff]
  %v225 = vld [vmem:[%s1 + $0x4f0] sm:$0xff]
  %v226 = vld [vmem:[%s1 + $0x4f8] sm:$0xff]
  %v227 = vld [vmem:[%s1 + $0x500] sm:$0xff]
  %v228 = vld [vmem:[%s1 + $0x508] sm:$0xff]
  %v229 = vld [vmem:[%s1 + $0x510] sm:$0xff]
  %v230 = vld [vmem:[%s1 + $0x518] sm:$0xff]
  %v231 = vld [vmem:[%s1 + $0x520] sm:$0xff]
  %v232 = vld [vmem:[%s1 + $0x528] sm:$0xff]
  %v233 = vld [vmem:[%s1 + $0x530] sm:$0xff]
  %v234 = vld [vmem:[%s1 + $0x538] sm:$0xff]
  %v235 = vld [vmem:[%s1 + $0x540] sm:$0xff]
  %v236 = vld [vmem:[%s1 + $0x548] sm:$0xff]
  %v237 = vld [vmem:[%s1 + $0x550] sm:$0xff]
  %v238 = vld [vmem:[%s1 + $0x558] sm:$0xff]
  %v239 = vld [vmem:[%s1 + $0x560] sm:$0xff]
  %v240 = vld [vmem:[%s1 + $0x568] sm:$0xff]
  %v241 = vld [vmem:[%s1 + $0x570] sm:$0xff]
  %v242 = vld [vmem:[%s1 + $0x578] sm:$0xff]
  %v243 = vld [vmem:[%s1 + $0x580] sm:$0xff]
  %v244 = vld [vmem:[%s1 + $0x588] sm:$0xff]
  %v245 = vld [vmem:[%s1 + $0x590] sm:$0xff]
  %v246 = vld [vmem:[%s1 + $0x598] sm:$0xff]
  %v247 = vld [vmem:[%s1 + $0x5a0] sm:$0xff]
  %v248 = vld [vmem:[%s1 + $0x5a8] sm:$0xff]
  %v249 = vld [vmem:[%s1 + $0x5b0] sm:$0xff]
  %v250 = vld [vmem:[%s1 + $0x5b8] sm:$0xff]
  %v251 = vld [vmem:[%s1 + $0x5c0] sm:$0xff]
  %v252 = vld [vmem:[%s1 + $0x5c8] sm:$0xff]
  %v253 = vld [vmem:[%s1 + $0x5d0] sm:$0xff]
  %v254 = vld [vmem:[%s1 + $0x5d8] sm:$0xff]
  %v255 = vld [vmem:[%s1 + $0x5e0] sm:$0xff]
  %v256 = vld [vmem:[%s1 + $0x5e8] sm:$0xff]
  %v257 = vld [vmem:[%s1 + $0x5f0] sm:$0xff]
  %v258 = vld [vmem:[%s1 + $0x5f8] sm:$0xff]
  %v259 = vld [vmem:[%s1 + $0x600] sm:$0xff]
  %v260 = vld [vmem:[%s1 + $0x608] sm:$0xff]
  %v261 = vld [vmem:[%s1 + $0x610] sm:$0xff]
  %v262 = vld [vmem:[%s1 + $0x618] sm:$0xff]
  %v263 = vld [vmem:[%s1 + $0x620] sm:$0xff]
  %v264 = vld [vmem:[%s1 + $0x628] sm:$0xff]
  %v265 = vld [vmem:[%s1 + $0x630] sm:$0xff]
  %v266 = vld [vmem:[%s1 + $0x638] sm:$0xff]
  %v267 = vld [vmem:[%s1 + $0x640] sm:$0xff]
  %v268 = vld [vmem:[%s1 + $0x648] sm:$0xff]
  %v269 = vld [vmem:[%s1 + $0x650] sm:$0xff]
  %v270 = vld [vmem:[%s1 + $0x658] sm:$0xff]
  %v271 = vld [vmem:[%s1 + $0x660] sm:$0xff]
  %v272 = vld [vmem:[%s1 + $0x668] sm:$0xff]
  %v273 = vld [vmem:[%s1 + $0x670] sm:$0xff]
  %v274 = vld [vmem:[%s1 + $0x678] sm:$0xff]
  %v275 = vld [vmem:[%s1 + $0x680] sm:$0xff]
  %v276 = vld [vmem:[%s1 + $0x688] sm:$0xff]
  %v277 = vld [vmem:[%s1 + $0x690] sm:$0xff]
  %v278 = vld [vmem:[%s1 + $0x698] sm:$0xff]
  %v279 = vld [vmem:[%s1 + $0x6a0] sm:$0xff]
  %v280 = vld [vmem:[%s1 + $0x6a8] sm:$0xff]
  %v281 = vld [vmem:[%s1 + $0x6b0] sm:$0xff]
  %v282 = vld [vmem:[%s1 + $0x6b8] sm:$0xff]
  %v283 = vld [vmem:[%s1 + $0x6c0] sm:$0xff]
  %v284 = vld [vmem:[%s1 + $0x6c8] sm:$0xff]
  %v285 = vld [vmem:[%s1 + $0x6d0] sm:$0xff]
  %v286 = vld [vmem:[%s1 + $0x6d8] sm:$0xff]
  %v287 = vld [vmem:[%s1 + $0x6e0] sm:$0xff]
  %v288 = vld [vmem:[%s1 + $0x6e8] sm:$0xff]
  %v289 = vld [vmem:[%s1 + $0x6f0] sm:$0xff]
  %v290 = vld [vmem:[%s1 + $0x6f8] sm:$0xff]
  %v291 = vld [vmem:[%s2] sm:$0xf]
  %v293 = vlaneseq
  %v294 = vshrl.u32 %v293, 7
  %v295 = vsub.s32 0, %v294
  %v296 = vrot.slane %v291, %v295
  %v297 = vlaneseq
  %v298 = vshrl.u32 %v297, 7
  %v299 = vsub.s32 1, %v298
  %v300 = vrot.slane %v291, %v299
  %v301 = vlaneseq
  %v302 = vshrl.u32 %v301, 7
  %v303 = vsub.s32 2, %v302
  %v304 = vrot.slane %v291, %v303
  %v305 = vlaneseq
  %v306 = vshrl.u32 %v305, 7
  %v307 = vsub.s32 3, %v306
  %v308 = vrot.slane %v291, %v307
  %v317 = vunpack.c.l.b16 %v63
  %v318 = vunpack.c.h.b16 %v63
  %v319 = vunpack.c.l.b16 %v64
  %v320 = vunpack.c.h.b16 %v64
  %v321 = vunpack.c.l.b16 %v65
  %v322 = vunpack.c.h.b16 %v65
  %v323 = vunpack.c.l.b16 %v66
  %v324 = vpack.c.b16 %v317, %v317
  %v325 = vpack.c.b16 %v318, %v318
  %v326 = vpack.c.b16 %v319, %v319
  %v327 = vpack.c.b16 %v320, %v320
  %v328 = vpack.c.b16 %v321, %v321
  %v329 = vpack.c.b16 %v322, %v322
  %v330 = vpack.c.b16 %v323, %v323
  %v562 = vunpack.c.l.b16 %v67
  %v563 = vunpack.c.h.b16 %v67
  %v564 = vunpack.c.l.b16 %v68
  %v565 = vunpack.c.h.b16 %v68
  %v566 = vunpack.c.l.b16 %v69
  %v567 = vunpack.c.h.b16 %v69
  %v568 = vunpack.c.l.b16 %v70
  %v569 = vunpack.c.h.b16 %v70
  %v570 = vunpack.c.l.b16 %v71
  %v571 = vunpack.c.h.b16 %v71
  %v572 = vunpack.c.l.b16 %v72
  %v573 = vunpack.c.h.b16 %v72
  %v574 = vunpack.c.l.b16 %v73
  %v575 = vunpack.c.h.b16 %v73
  %v576 = vunpack.c.l.b16 %v74
  %v577 = vunpack.c.h.b16 %v74
  %v578 = vunpack.c.l.b16 %v75
  %v579 = vunpack.c.h.b16 %v75
  %v580 = vunpack.c.l.b16 %v76
  %v581 = vunpack.c.h.b16 %v76
  %v582 = vunpack.c.l.b16 %v77
  %v583 = vunpack.c.h.b16 %v77
  %v584 = vunpack.c.l.b16 %v78
  %v585 = vunpack.c.h.b16 %v78
  %v586 = vunpack.c.l.b16 %v79
  %v587 = vunpack.c.h.b16 %v79
  %v588 = vunpack.c.l.b16 %v80
  %v589 = vunpack.c.h.b16 %v80
  %v590 = vunpack.c.l.b16 %v81
  %v591 = vunpack.c.h.b16 %v81
  %v592 = vunpack.c.l.b16 %v82
  %v593 = vunpack.c.h.b16 %v82
  %v594 = vunpack.c.l.b16 %v83
  %v595 = vunpack.c.h.b16 %v83
  %v596 = vunpack.c.l.b16 %v84
  %v597 = vunpack.c.h.b16 %v84
  %v598 = vunpack.c.l.b16 %v85
  %v599 = vunpack.c.h.b16 %v85
  %v600 = vunpack.c.l.b16 %v86
  %v601 = vunpack.c.h.b16 %v86
  %v602 = vunpack.c.l.b16 %v87
  %v603 = vunpack.c.h.b16 %v87
  %v604 = vunpack.c.l.b16 %v88
  %v605 = vunpack.c.h.b16 %v88
  %v606 = vunpack.c.l.b16 %v89
  %v607 = vunpack.c.h.b16 %v89
  %v608 = vunpack.c.l.b16 %v90
  %v609 = vunpack.c.h.b16 %v90
  %v610 = vunpack.c.l.b16 %v91
  %v611 = vunpack.c.h.b16 %v91
  %v612 = vunpack.c.l.b16 %v92
  %v613 = vunpack.c.h.b16 %v92
  %v614 = vunpack.c.l.b16 %v93
  %v615 = vunpack.c.h.b16 %v93
  %v616 = vunpack.c.l.b16 %v94
  %v617 = vunpack.c.h.b16 %v94
  %v618 = vunpack.c.l.b16 %v95
  %v619 = vunpack.c.h.b16 %v95
  %v620 = vunpack.c.l.b16 %v96
  %v621 = vunpack.c.h.b16 %v96
  %v622 = vunpack.c.l.b16 %v97
  %v623 = vunpack.c.h.b16 %v97
  %v624 = vunpack.c.l.b16 %v98
  %v625 = vunpack.c.h.b16 %v98
  %v626 = vunpack.c.l.b16 %v99
  %v627 = vunpack.c.h.b16 %v99
  %v628 = vunpack.c.l.b16 %v100
  %v629 = vunpack.c.h.b16 %v100
  %v630 = vunpack.c.l.b16 %v101
  %v631 = vunpack.c.h.b16 %v101
  %v632 = vunpack.c.l.b16 %v102
  %v633 = vunpack.c.h.b16 %v102
  %v634 = vunpack.c.l.b16 %v103
  %v635 = vunpack.c.h.b16 %v103
  %v636 = vunpack.c.l.b16 %v104
  %v637 = vunpack.c.h.b16 %v104
  %v638 = vunpack.c.l.b16 %v105
  %v639 = vunpack.c.h.b16 %v105
  %v640 = vunpack.c.l.b16 %v106
  %v641 = vunpack.c.h.b16 %v106
  %v642 = vunpack.c.l.b16 %v107
  %v643 = vunpack.c.h.b16 %v107
  %v644 = vunpack.c.l.b16 %v108
  %v645 = vunpack.c.h.b16 %v108
  %v646 = vunpack.c.l.b16 %v109
  %v647 = vunpack.c.h.b16 %v109
  %v648 = vunpack.c.l.b16 %v110
  %v649 = vunpack.c.h.b16 %v110
  %v650 = vunpack.c.l.b16 %v111
  %v651 = vunpack.c.h.b16 %v111
  %v652 = vunpack.c.l.b16 %v112
  %v653 = vunpack.c.h.b16 %v112
  %v654 = vunpack.c.l.b16 %v113
  %v655 = vunpack.c.h.b16 %v113
  %v656 = vunpack.c.l.b16 %v114
  %v657 = vunpack.c.h.b16 %v114
  %v658 = vunpack.c.l.b16 %v115
  %v659 = vunpack.c.h.b16 %v115
  %v660 = vunpack.c.l.b16 %v116
  %v661 = vunpack.c.h.b16 %v116
  %v662 = vunpack.c.l.b16 %v117
  %v663 = vunpack.c.h.b16 %v117
  %v664 = vunpack.c.l.b16 %v118
  %v665 = vunpack.c.h.b16 %v118
  %v666 = vunpack.c.l.b16 %v119
  %v667 = vunpack.c.h.b16 %v119
  %v668 = vunpack.c.l.b16 %v120
  %v669 = vunpack.c.h.b16 %v120
  %v670 = vunpack.c.l.b16 %v121
  %v671 = vunpack.c.h.b16 %v121
  %v672 = vunpack.c.l.b16 %v122
  %v673 = vunpack.c.h.b16 %v122
  %v674 = vunpack.c.l.b16 %v123
  %v675 = vunpack.c.h.b16 %v123
  %v676 = vunpack.c.l.b16 %v124
  %v677 = vunpack.c.h.b16 %v124
  %v678 = vunpack.c.l.b16 %v125
  %v679 = vunpack.c.h.b16 %v125
  %v680 = vunpack.c.l.b16 %v126
  %v681 = vunpack.c.h.b16 %v126
  %v682 = vunpack.c.l.b16 %v127
  %v683 = vunpack.c.h.b16 %v127
  %v684 = vunpack.c.l.b16 %v128
  %v685 = vunpack.c.h.b16 %v128
  %v686 = vunpack.c.l.b16 %v129
  %v687 = vunpack.c.h.b16 %v129
  %v688 = vunpack.c.l.b16 %v130
  %v689 = vunpack.c.h.b16 %v130
  %v690 = vunpack.c.l.b16 %v131
  %v691 = vunpack.c.h.b16 %v131
  %v692 = vunpack.c.l.b16 %v132
  %v693 = vunpack.c.h.b16 %v132
  %v694 = vunpack.c.l.b16 %v133
  %v695 = vunpack.c.h.b16 %v133
  %v696 = vunpack.c.l.b16 %v134
  %v697 = vunpack.c.h.b16 %v134
  %v698 = vunpack.c.l.b16 %v135
  %v699 = vunpack.c.h.b16 %v135
  %v700 = vunpack.c.l.b16 %v136
  %v701 = vunpack.c.h.b16 %v136
  %v702 = vunpack.c.l.b16 %v137
  %v703 = vunpack.c.h.b16 %v137
  %v704 = vunpack.c.l.b16 %v138
  %v705 = vunpack.c.h.b16 %v138
  %v706 = vunpack.c.l.b16 %v139
  %v707 = vunpack.c.h.b16 %v139
  %v708 = vunpack.c.l.b16 %v140
  %v709 = vunpack.c.h.b16 %v140
  %v710 = vunpack.c.l.b16 %v141
  %v711 = vunpack.c.h.b16 %v141
  %v712 = vunpack.c.l.b16 %v142
  %v713 = vunpack.c.h.b16 %v142
  %v714 = vunpack.c.l.b16 %v143
  %v715 = vunpack.c.h.b16 %v143
  %v716 = vunpack.c.l.b16 %v144
  %v717 = vunpack.c.h.b16 %v144
  %v718 = vunpack.c.l.b16 %v145
  %v719 = vunpack.c.h.b16 %v145
  %v720 = vunpack.c.l.b16 %v146
  %v721 = vunpack.c.h.b16 %v146
  %v722 = vunpack.c.l.b16 %v147
  %v723 = vunpack.c.h.b16 %v147
  %v724 = vunpack.c.l.b16 %v148
  %v725 = vunpack.c.h.b16 %v148
  %v726 = vunpack.c.l.b16 %v149
  %v727 = vunpack.c.h.b16 %v149
  %v728 = vunpack.c.l.b16 %v150
  %v729 = vunpack.c.h.b16 %v150
  %v730 = vunpack.c.l.b16 %v151
  %v731 = vunpack.c.h.b16 %v151
  %v732 = vunpack.c.l.b16 %v152
  %v733 = vunpack.c.h.b16 %v152
  %v734 = vunpack.c.l.b16 %v153
  %v735 = vunpack.c.h.b16 %v153
  %v736 = vunpack.c.l.b16 %v154
  %v737 = vunpack.c.h.b16 %v154
  %v738 = vunpack.c.l.b16 %v155
  %v739 = vunpack.c.h.b16 %v155
  %v740 = vunpack.c.l.b16 %v156
  %v741 = vunpack.c.h.b16 %v156
  %v742 = vunpack.c.l.b16 %v157
  %v743 = vunpack.c.h.b16 %v157
  %v744 = vunpack.c.l.b16 %v158
  %v745 = vunpack.c.h.b16 %v158
  %v746 = vunpack.c.l.b16 %v159
  %v747 = vunpack.c.h.b16 %v159
  %v748 = vunpack.c.l.b16 %v160
  %v749 = vunpack.c.h.b16 %v160
  %v750 = vunpack.c.l.b16 %v161
  %v751 = vunpack.c.h.b16 %v161
  %v752 = vunpack.c.l.b16 %v162
  %v753 = vunpack.c.h.b16 %v162
  %v754 = vunpack.c.l.b16 %v163
  %v755 = vunpack.c.h.b16 %v163
  %v756 = vunpack.c.l.b16 %v164
  %v757 = vunpack.c.h.b16 %v164
  %v758 = vunpack.c.l.b16 %v165
  %v759 = vunpack.c.h.b16 %v165
  %v760 = vunpack.c.l.b16 %v166
  %v761 = vunpack.c.h.b16 %v166
  %v762 = vunpack.c.l.b16 %v167
  %v763 = vunpack.c.h.b16 %v167
  %v764 = vunpack.c.l.b16 %v168
  %v765 = vunpack.c.h.b16 %v168
  %v766 = vunpack.c.l.b16 %v169
  %v767 = vunpack.c.h.b16 %v169
  %v768 = vunpack.c.l.b16 %v170
  %v769 = vunpack.c.h.b16 %v170
  %v770 = vunpack.c.l.b16 %v171
  %v771 = vunpack.c.h.b16 %v171
  %v772 = vunpack.c.l.b16 %v172
  %v773 = vunpack.c.h.b16 %v172
  %v774 = vunpack.c.l.b16 %v173
  %v775 = vunpack.c.h.b16 %v173
  %v776 = vunpack.c.l.b16 %v174
  %v777 = vunpack.c.h.b16 %v174
  %v778 = vunpack.c.l.b16 %v175
  %v779 = vunpack.c.h.b16 %v175
  %v780 = vunpack.c.l.b16 %v176
  %v781 = vunpack.c.h.b16 %v176
  %v782 = vunpack.c.l.b16 %v177
  %v783 = vunpack.c.h.b16 %v177
  %v784 = vunpack.c.l.b16 %v178
  %v785 = vunpack.c.h.b16 %v178
  %v786 = vunpack.c.l.b16 %v179
  %v787 = vunpack.c.h.b16 %v179
  %v788 = vunpack.c.l.b16 %v180
  %v789 = vunpack.c.h.b16 %v180
  %v790 = vunpack.c.l.b16 %v181
  %v791 = vunpack.c.h.b16 %v181
  %v792 = vunpack.c.l.b16 %v182
  %v793 = vunpack.c.h.b16 %v182
  %v794 = vunpack.c.l.b16 %v183
  %v795 = vunpack.c.h.b16 %v183
  %v796 = vunpack.c.l.b16 %v184
  %v797 = vunpack.c.h.b16 %v184
  %v798 = vunpack.c.l.b16 %v185
  %v799 = vunpack.c.h.b16 %v185
  %v800 = vunpack.c.l.b16 %v186
  %v801 = vunpack.c.h.b16 %v186
  %v802 = vunpack.c.l.b16 %v187
  %v803 = vunpack.c.h.b16 %v187
  %v804 = vunpack.c.l.b16 %v188
  %v805 = vunpack.c.h.b16 %v188
  %v806 = vunpack.c.l.b16 %v189
  %v807 = vunpack.c.h.b16 %v189
  %v808 = vunpack.c.l.b16 %v190
  %v809 = vunpack.c.h.b16 %v190
  %v810 = vunpack.c.l.b16 %v191
  %v811 = vunpack.c.h.b16 %v191
  %v812 = vunpack.c.l.b16 %v192
  %v813 = vunpack.c.h.b16 %v192
  %v814 = vunpack.c.l.b16 %v193
  %v815 = vunpack.c.h.b16 %v193
  %v816 = vunpack.c.l.b16 %v194
  %v817 = vunpack.c.h.b16 %v194
  %v818 = vunpack.c.l.b16 %v195
  %v819 = vunpack.c.h.b16 %v195
  %v820 = vunpack.c.l.b16 %v196
  %v821 = vunpack.c.h.b16 %v196
  %v822 = vunpack.c.l.b16 %v197
  %v823 = vunpack.c.h.b16 %v197
  %v824 = vunpack.c.l.b16 %v198
  %v825 = vunpack.c.h.b16 %v198
  %v826 = vunpack.c.l.b16 %v199
  %v827 = vunpack.c.h.b16 %v199
  %v828 = vunpack.c.l.b16 %v200
  %v829 = vunpack.c.h.b16 %v200
  %v830 = vunpack.c.l.b16 %v201
  %v831 = vunpack.c.h.b16 %v201
  %v832 = vunpack.c.l.b16 %v202
  %v833 = vunpack.c.h.b16 %v202
  %v834 = vunpack.c.l.b16 %v203
  %v835 = vunpack.c.h.b16 %v203
  %v836 = vunpack.c.l.b16 %v204
  %v837 = vunpack.c.h.b16 %v204
  %v838 = vunpack.c.l.b16 %v205
  %v839 = vunpack.c.h.b16 %v205
  %v840 = vunpack.c.l.b16 %v206
  %v841 = vunpack.c.h.b16 %v206
  %v842 = vunpack.c.l.b16 %v207
  %v843 = vunpack.c.h.b16 %v207
  %v844 = vunpack.c.l.b16 %v208
  %v845 = vunpack.c.h.b16 %v208
  %v846 = vunpack.c.l.b16 %v209
  %v847 = vunpack.c.h.b16 %v209
  %v848 = vunpack.c.l.b16 %v210
  %v849 = vunpack.c.h.b16 %v210
  %v850 = vunpack.c.l.b16 %v211
  %v851 = vunpack.c.h.b16 %v211
  %v852 = vunpack.c.l.b16 %v212
  %v853 = vunpack.c.h.b16 %v212
  %v854 = vunpack.c.l.b16 %v213
  %v855 = vunpack.c.h.b16 %v213
  %v856 = vunpack.c.l.b16 %v214
  %v857 = vunpack.c.h.b16 %v214
  %v858 = vunpack.c.l.b16 %v215
  %v859 = vunpack.c.h.b16 %v215
  %v860 = vunpack.c.l.b16 %v216
  %v861 = vunpack.c.h.b16 %v216
  %v862 = vunpack.c.l.b16 %v217
  %v863 = vunpack.c.h.b16 %v217
  %v864 = vunpack.c.l.b16 %v218
  %v865 = vunpack.c.h.b16 %v218
  %v866 = vunpack.c.l.b16 %v219
  %v867 = vunpack.c.h.b16 %v219
  %v868 = vunpack.c.l.b16 %v220
  %v869 = vunpack.c.h.b16 %v220
  %v870 = vunpack.c.l.b16 %v221
  %v871 = vunpack.c.h.b16 %v221
  %v872 = vunpack.c.l.b16 %v222
  %v873 = vunpack.c.h.b16 %v222
  %v874 = vunpack.c.l.b16 %v223
  %v875 = vunpack.c.h.b16 %v223
  %v876 = vunpack.c.l.b16 %v224
  %v877 = vunpack.c.h.b16 %v224
  %v878 = vunpack.c.l.b16 %v225
  %v879 = vunpack.c.h.b16 %v225
  %v880 = vunpack.c.l.b16 %v226
  %v881 = vunpack.c.h.b16 %v226
  %v882 = vunpack.c.l.b16 %v227
  %v883 = vunpack.c.h.b16 %v227
  %v884 = vunpack.c.l.b16 %v228
  %v885 = vunpack.c.h.b16 %v228
  %v886 = vunpack.c.l.b16 %v229
  %v887 = vunpack.c.h.b16 %v229
  %v888 = vunpack.c.l.b16 %v230
  %v889 = vunpack.c.h.b16 %v230
  %v890 = vunpack.c.l.b16 %v231
  %v891 = vunpack.c.h.b16 %v231
  %v892 = vunpack.c.l.b16 %v232
  %v893 = vunpack.c.h.b16 %v232
  %v894 = vunpack.c.l.b16 %v233
  %v895 = vunpack.c.h.b16 %v233
  %v896 = vunpack.c.l.b16 %v234
  %v897 = vunpack.c.h.b16 %v234
  %v898 = vunpack.c.l.b16 %v235
  %v899 = vunpack.c.h.b16 %v235
  %v900 = vunpack.c.l.b16 %v236
  %v901 = vunpack.c.h.b16 %v236
  %v902 = vunpack.c.l.b16 %v237
  %v903 = vunpack.c.h.b16 %v237
  %v904 = vunpack.c.l.b16 %v238
  %v905 = vunpack.c.h.b16 %v238
  %v906 = vunpack.c.l.b16 %v239
  %v907 = vunpack.c.h.b16 %v239
  %v908 = vunpack.c.l.b16 %v240
  %v909 = vunpack.c.h.b16 %v240
  %v910 = vunpack.c.l.b16 %v241
  %v911 = vunpack.c.h.b16 %v241
  %v912 = vunpack.c.l.b16 %v242
  %v913 = vunpack.c.h.b16 %v242
  %v914 = vunpack.c.l.b16 %v243
  %v915 = vunpack.c.h.b16 %v243
  %v916 = vunpack.c.l.b16 %v244
  %v917 = vunpack.c.h.b16 %v244
  %v918 = vunpack.c.l.b16 %v245
  %v919 = vunpack.c.h.b16 %v245
  %v920 = vunpack.c.l.b16 %v246
  %v921 = vunpack.c.h.b16 %v246
  %v922 = vunpack.c.l.b16 %v247
  %v923 = vunpack.c.h.b16 %v247
  %v924 = vunpack.c.l.b16 %v248
  %v925 = vunpack.c.h.b16 %v248
  %v926 = vunpack.c.l.b16 %v249
  %v927 = vunpack.c.h.b16 %v249
  %v928 = vunpack.c.l.b16 %v250
  %v929 = vunpack.c.h.b16 %v250
  %v930 = vunpack.c.l.b16 %v251
  %v931 = vunpack.c.h.b16 %v251
  %v932 = vunpack.c.l.b16 %v252
  %v933 = vunpack.c.h.b16 %v252
  %v934 = vunpack.c.l.b16 %v253
  %v935 = vunpack.c.h.b16 %v253
  %v936 = vunpack.c.l.b16 %v254
  %v937 = vunpack.c.h.b16 %v254
  %v938 = vunpack.c.l.b16 %v255
  %v939 = vunpack.c.h.b16 %v255
  %v940 = vunpack.c.l.b16 %v256
  %v941 = vunpack.c.h.b16 %v256
  %v942 = vunpack.c.l.b16 %v257
  %v943 = vunpack.c.h.b16 %v257
  %v944 = vunpack.c.l.b16 %v258
  %v945 = vunpack.c.h.b16 %v258
  %v946 = vunpack.c.l.b16 %v259
  %v947 = vunpack.c.h.b16 %v259
  %v948 = vunpack.c.l.b16 %v260
  %v949 = vunpack.c.h.b16 %v260
  %v950 = vunpack.c.l.b16 %v261
  %v951 = vunpack.c.h.b16 %v261
  %v952 = vunpack.c.l.b16 %v262
  %v953 = vunpack.c.h.b16 %v262
  %v954 = vunpack.c.l.b16 %v263
  %v955 = vunpack.c.h.b16 %v263
  %v956 = vunpack.c.l.b16 %v264
  %v957 = vunpack.c.h.b16 %v264
  %v958 = vunpack.c.l.b16 %v265
  %v959 = vunpack.c.h.b16 %v265
  %v960 = vunpack.c.l.b16 %v266
  %v961 = vunpack.c.h.b16 %v266
  %v962 = vunpack.c.l.b16 %v267
  %v963 = vunpack.c.h.b16 %v267
  %v964 = vunpack.c.l.b16 %v268
  %v965 = vunpack.c.h.b16 %v268
  %v966 = vunpack.c.l.b16 %v269
  %v967 = vunpack.c.h.b16 %v269
  %v968 = vunpack.c.l.b16 %v270
  %v969 = vunpack.c.h.b16 %v270
  %v970 = vunpack.c.l.b16 %v271
  %v971 = vunpack.c.h.b16 %v271
  %v972 = vunpack.c.l.b16 %v272
  %v973 = vunpack.c.h.b16 %v272
  %v974 = vunpack.c.l.b16 %v273
  %v975 = vunpack.c.h.b16 %v273
  %v976 = vunpack.c.l.b16 %v274
  %v977 = vunpack.c.h.b16 %v274
  %v978 = vunpack.c.l.b16 %v275
  %v979 = vunpack.c.h.b16 %v275
  %v980 = vunpack.c.l.b16 %v276
  %v981 = vunpack.c.h.b16 %v276
  %v982 = vunpack.c.l.b16 %v277
  %v983 = vunpack.c.h.b16 %v277
  %v984 = vunpack.c.l.b16 %v278
  %v985 = vunpack.c.h.b16 %v278
  %v986 = vunpack.c.l.b16 %v279
  %v987 = vunpack.c.h.b16 %v279
  %v988 = vunpack.c.l.b16 %v280
  %v989 = vunpack.c.h.b16 %v280
  %v990 = vunpack.c.l.b16 %v281
  %v991 = vunpack.c.h.b16 %v281
  %v992 = vunpack.c.l.b16 %v282
  %v993 = vunpack.c.h.b16 %v282
  %v994 = vunpack.c.l.b16 %v283
  %v995 = vunpack.c.h.b16 %v283
  %v996 = vunpack.c.l.b16 %v284
  %v997 = vunpack.c.h.b16 %v284
  %v998 = vunpack.c.l.b16 %v285
  %v999 = vunpack.c.h.b16 %v285
  %v1000 = vunpack.c.l.b16 %v286
  %v1001 = vunpack.c.h.b16 %v286
  %v1002 = vunpack.c.l.b16 %v287
  %v1003 = vunpack.c.h.b16 %v287
  %v1004 = vunpack.c.l.b16 %v288
  %v1005 = vunpack.c.h.b16 %v288
  %v1006 = vunpack.c.l.b16 %v289
  %v1007 = vunpack.c.h.b16 %v289
  %v1008 = vunpack.c.l.b16 %v290
  %v1009 = vunpack.c.h.b16 %v290
  %v1010 = vpack.c.b16 %v566, %v562
  %v1011 = vpack.c.b16 %v567, %v563
  %v1012 = vpack.c.b16 %v568, %v564
  %v1013 = vpack.c.b16 %v569, %v565
  %v1014 = vpack.c.b16 %v574, %v570
  %v1015 = vpack.c.b16 %v575, %v571
  %v1016 = vpack.c.b16 %v576, %v572
  %v1017 = vpack.c.b16 %v577, %v573
  %v1018 = vpack.c.b16 %v582, %v578
  %v1019 = vpack.c.b16 %v583, %v579
  %v1020 = vpack.c.b16 %v584, %v580
  %v1021 = vpack.c.b16 %v585, %v581
  %v1022 = vpack.c.b16 %v590, %v586
  %v1023 = vpack.c.b16 %v591, %v587
  %v1024 = vpack.c.b16 %v592, %v588
  %v1025 = vpack.c.b16 %v593, %v589
  %v1026 = vpack.c.b16 %v598, %v594
  %v1027 = vpack.c.b16 %v599, %v595
  %v1028 = vpack.c.b16 %v600, %v596
  %v1029 = vpack.c.b16 %v601, %v597
  %v1030 = vpack.c.b16 %v606, %v602
  %v1031 = vpack.c.b16 %v607, %v603
  %v1032 = vpack.c.b16 %v608, %v604
  %v1033 = vpack.c.b16 %v609, %v605
  %v1034 = vpack.c.b16 %v614, %v610
  %v1035 = vpack.c.b16 %v615, %v611
  %v1036 = vpack.c.b16 %v616, %v612
  %v1037 = vpack.c.b16 %v617, %v613
  %v1038 = vpack.c.b16 %v622, %v618
  %v1039 = vpack.c.b16 %v623, %v619
  %v1040 = vpack.c.b16 %v624, %v620
  %v1041 = vpack.c.b16 %v625, %v621
  %v1042 = vpack.c.b16 %v630, %v626
  %v1043 = vpack.c.b16 %v631, %v627
  %v1044 = vpack.c.b16 %v632, %v628
  %v1045 = vpack.c.b16 %v633, %v629
  %v1046 = vpack.c.b16 %v638, %v634
  %v1047 = vpack.c.b16 %v639, %v635
  %v1048 = vpack.c.b16 %v640, %v636
  %v1049 = vpack.c.b16 %v641, %v637
  %v1050 = vpack.c.b16 %v646, %v642
  %v1051 = vpack.c.b16 %v647, %v643
  %v1052 = vpack.c.b16 %v648, %v644
  %v1053 = vpack.c.b16 %v649, %v645
  %v1054 = vpack.c.b16 %v654, %v650
  %v1055 = vpack.c.b16 %v655, %v651
  %v1056 = vpack.c.b16 %v656, %v652
  %v1057 = vpack.c.b16 %v657, %v653
  %v1058 = vpack.c.b16 %v662, %v658
  %v1059 = vpack.c.b16 %v663, %v659
  %v1060 = vpack.c.b16 %v664, %v660
  %v1061 = vpack.c.b16 %v665, %v661
  %v1062 = vpack.c.b16 %v670, %v666
  %v1063 = vpack.c.b16 %v671, %v667
  %v1064 = vpack.c.b16 %v672, %v668
  %v1065 = vpack.c.b16 %v673, %v669
  %v1066 = vpack.c.b16 %v678, %v674
  %v1067 = vpack.c.b16 %v679, %v675
  %v1068 = vpack.c.b16 %v680, %v676
  %v1069 = vpack.c.b16 %v681, %v677
  %v1070 = vpack.c.b16 %v686, %v682
  %v1071 = vpack.c.b16 %v687, %v683
  %v1072 = vpack.c.b16 %v688, %v684
  %v1073 = vpack.c.b16 %v689, %v685
  %v1074 = vpack.c.b16 %v694, %v690
  %v1075 = vpack.c.b16 %v695, %v691
  %v1076 = vpack.c.b16 %v696, %v692
  %v1077 = vpack.c.b16 %v697, %v693
  %v1078 = vpack.c.b16 %v702, %v698
  %v1079 = vpack.c.b16 %v703, %v699
  %v1080 = vpack.c.b16 %v704, %v700
  %v1081 = vpack.c.b16 %v705, %v701
  %v1082 = vpack.c.b16 %v710, %v706
  %v1083 = vpack.c.b16 %v711, %v707
  %v1084 = vpack.c.b16 %v712, %v708
  %v1085 = vpack.c.b16 %v713, %v709
  %v1086 = vpack.c.b16 %v718, %v714
  %v1087 = vpack.c.b16 %v719, %v715
  %v1088 = vpack.c.b16 %v720, %v716
  %v1089 = vpack.c.b16 %v721, %v717
  %v1090 = vpack.c.b16 %v726, %v722
  %v1091 = vpack.c.b16 %v727, %v723
  %v1092 = vpack.c.b16 %v728, %v724
  %v1093 = vpack.c.b16 %v729, %v725
  %v1094 = vpack.c.b16 %v734, %v730
  %v1095 = vpack.c.b16 %v735, %v731
  %v1096 = vpack.c.b16 %v736, %v732
  %v1097 = vpack.c.b16 %v737, %v733
  %v1098 = vpack.c.b16 %v742, %v738
  %v1099 = vpack.c.b16 %v743, %v739
  %v1100 = vpack.c.b16 %v744, %v740
  %v1101 = vpack.c.b16 %v745, %v741
  %v1102 = vpack.c.b16 %v750, %v746
  %v1103 = vpack.c.b16 %v751, %v747
  %v1104 = vpack.c.b16 %v752, %v748
  %v1105 = vpack.c.b16 %v753, %v749
  %v1106 = vpack.c.b16 %v758, %v754
  %v1107 = vpack.c.b16 %v759, %v755
  %v1108 = vpack.c.b16 %v760, %v756
  %v1109 = vpack.c.b16 %v761, %v757
  %v1110 = vpack.c.b16 %v766, %v762
  %v1111 = vpack.c.b16 %v767, %v763
  %v1112 = vpack.c.b16 %v768, %v764
  %v1113 = vpack.c.b16 %v769, %v765
  %v1114 = vpack.c.b16 %v774, %v770
  %v1115 = vpack.c.b16 %v775, %v771
  %v1116 = vpack.c.b16 %v776, %v772
  %v1117 = vpack.c.b16 %v777, %v773
  %v1118 = vpack.c.b16 %v782, %v778
  %v1119 = vpack.c.b16 %v783, %v779
  %v1120 = vpack.c.b16 %v784, %v780
  %v1121 = vpack.c.b16 %v785, %v781
  %v1122 = vpack.c.b16 %v790, %v786
  %v1123 = vpack.c.b16 %v791, %v787
  %v1124 = vpack.c.b16 %v792, %v788
  %v1125 = vpack.c.b16 %v793, %v789
  %v1126 = vpack.c.b16 %v798, %v794
  %v1127 = vpack.c.b16 %v799, %v795
  %v1128 = vpack.c.b16 %v800, %v796
  %v1129 = vpack.c.b16 %v801, %v797
  %v1130 = vpack.c.b16 %v806, %v802
  %v1131 = vpack.c.b16 %v807, %v803
  %v1132 = vpack.c.b16 %v808, %v804
  %v1133 = vpack.c.b16 %v809, %v805
  %v1134 = vpack.c.b16 %v814, %v810
  %v1135 = vpack.c.b16 %v815, %v811
  %v1136 = vpack.c.b16 %v816, %v812
  %v1137 = vpack.c.b16 %v817, %v813
  %v1138 = vpack.c.b16 %v822, %v818
  %v1139 = vpack.c.b16 %v823, %v819
  %v1140 = vpack.c.b16 %v824, %v820
  %v1141 = vpack.c.b16 %v825, %v821
  %v1142 = vpack.c.b16 %v830, %v826
  %v1143 = vpack.c.b16 %v831, %v827
  %v1144 = vpack.c.b16 %v832, %v828
  %v1145 = vpack.c.b16 %v833, %v829
  %v1146 = vpack.c.b16 %v838, %v834
  %v1147 = vpack.c.b16 %v839, %v835
  %v1148 = vpack.c.b16 %v840, %v836
  %v1149 = vpack.c.b16 %v841, %v837
  %v1150 = vpack.c.b16 %v846, %v842
  %v1151 = vpack.c.b16 %v847, %v843
  %v1152 = vpack.c.b16 %v848, %v844
  %v1153 = vpack.c.b16 %v849, %v845
  %v1154 = vpack.c.b16 %v854, %v850
  %v1155 = vpack.c.b16 %v855, %v851
  %v1156 = vpack.c.b16 %v856, %v852
  %v1157 = vpack.c.b16 %v857, %v853
  %v1158 = vpack.c.b16 %v862, %v858
  %v1159 = vpack.c.b16 %v863, %v859
  %v1160 = vpack.c.b16 %v864, %v860
  %v1161 = vpack.c.b16 %v865, %v861
  %v1162 = vpack.c.b16 %v870, %v866
  %v1163 = vpack.c.b16 %v871, %v867
  %v1164 = vpack.c.b16 %v872, %v868
  %v1165 = vpack.c.b16 %v873, %v869
  %v1166 = vpack.c.b16 %v878, %v874
  %v1167 = vpack.c.b16 %v879, %v875
  %v1168 = vpack.c.b16 %v880, %v876
  %v1169 = vpack.c.b16 %v881, %v877
  %v1170 = vpack.c.b16 %v886, %v882
  %v1171 = vpack.c.b16 %v887, %v883
  %v1172 = vpack.c.b16 %v888, %v884
  %v1173 = vpack.c.b16 %v889, %v885
  %v1174 = vpack.c.b16 %v894, %v890
  %v1175 = vpack.c.b16 %v895, %v891
  %v1176 = vpack.c.b16 %v896, %v892
  %v1177 = vpack.c.b16 %v897, %v893
  %v1178 = vpack.c.b16 %v902, %v898
  %v1179 = vpack.c.b16 %v903, %v899
  %v1180 = vpack.c.b16 %v904, %v900
  %v1181 = vpack.c.b16 %v905, %v901
  %v1182 = vpack.c.b16 %v910, %v906
  %v1183 = vpack.c.b16 %v911, %v907
  %v1184 = vpack.c.b16 %v912, %v908
  %v1185 = vpack.c.b16 %v913, %v909
  %v1186 = vpack.c.b16 %v918, %v914
  %v1187 = vpack.c.b16 %v919, %v915
  %v1188 = vpack.c.b16 %v920, %v916
  %v1189 = vpack.c.b16 %v921, %v917
  %v1190 = vpack.c.b16 %v926, %v922
  %v1191 = vpack.c.b16 %v927, %v923
  %v1192 = vpack.c.b16 %v928, %v924
  %v1193 = vpack.c.b16 %v929, %v925
  %v1194 = vpack.c.b16 %v934, %v930
  %v1195 = vpack.c.b16 %v935, %v931
  %v1196 = vpack.c.b16 %v936, %v932
  %v1197 = vpack.c.b16 %v937, %v933
  %v1198 = vpack.c.b16 %v942, %v938
  %v1199 = vpack.c.b16 %v943, %v939
  %v1200 = vpack.c.b16 %v944, %v940
  %v1201 = vpack.c.b16 %v945, %v941
  %v1202 = vpack.c.b16 %v950, %v946
  %v1203 = vpack.c.b16 %v951, %v947
  %v1204 = vpack.c.b16 %v952, %v948
  %v1205 = vpack.c.b16 %v953, %v949
  %v1206 = vpack.c.b16 %v958, %v954
  %v1207 = vpack.c.b16 %v959, %v955
  %v1208 = vpack.c.b16 %v960, %v956
  %v1209 = vpack.c.b16 %v961, %v957
  %v1210 = vpack.c.b16 %v966, %v962
  %v1211 = vpack.c.b16 %v967, %v963
  %v1212 = vpack.c.b16 %v968, %v964
  %v1213 = vpack.c.b16 %v969, %v965
  %v1214 = vpack.c.b16 %v974, %v970
  %v1215 = vpack.c.b16 %v975, %v971
  %v1216 = vpack.c.b16 %v976, %v972
  %v1217 = vpack.c.b16 %v977, %v973
  %v1218 = vpack.c.b16 %v982, %v978
  %v1219 = vpack.c.b16 %v983, %v979
  %v1220 = vpack.c.b16 %v984, %v980
  %v1221 = vpack.c.b16 %v985, %v981
  %v1222 = vpack.c.b16 %v990, %v986
  %v1223 = vpack.c.b16 %v991, %v987
  %v1224 = vpack.c.b16 %v992, %v988
  %v1225 = vpack.c.b16 %v993, %v989
  %v1226 = vpack.c.b16 %v998, %v994
  %v1227 = vpack.c.b16 %v999, %v995
  %v1228 = vpack.c.b16 %v1000, %v996
  %v1229 = vpack.c.b16 %v1001, %v997
  %v1230 = vpack.c.b16 %v1006, %v1002
  %v1231 = vpack.c.b16 %v1007, %v1003
  %v1232 = vpack.c.b16 %v1008, %v1004
  %v1233 = vpack.c.b16 %v1009, %v1005
  %1458 = vmatprep.subr.bf16.mxu0 %v1011
  %1459 = vmatpush1.bf16.msra.mxu0 %v1010
  %1460 = vmatprep.subr.bf16.mxu0 %v1015
  %1461 = vmatpush1.bf16.msra.mxu0 %v1014
  %1462 = vmatprep.subr.bf16.mxu0 %v1019
  %1463 = vmatpush1.bf16.msra.mxu0 %v1018
  %1464 = vmatprep.subr.bf16.mxu0 %v1023
  %1465 = vmatpush1.bf16.msra.mxu0 %v1022
  %1466 = vmatprep.subr.bf16.mxu0 %v1027
  %1467 = vmatpush1.bf16.msra.mxu0 %v1026
  %1468 = vmatprep.subr.bf16.mxu0 %v1031
  %1469 = vmatpush1.bf16.msra.mxu0 %v1030
  %1470 = vmatprep.subr.bf16.mxu0 %v1035
  %1471 = vmatpush1.bf16.msra.mxu0 %v1034
  %1472 = vmatprep.subr.bf16.mxu0 %v1039
  %1473 = vmatpush1.bf16.msra.mxu0 %v1038
  %1474 = vmatprep.subr.bf16.mxu0 %v1043
  %1475 = vmatpush1.bf16.msra.mxu0 %v1042
  %1476 = vmatprep.subr.bf16.mxu0 %v1047
  %1477 = vmatpush1.bf16.msra.mxu0 %v1046
  %1478 = vmatprep.subr.bf16.mxu0 %v1051
  %1479 = vmatpush1.bf16.msra.mxu0 %v1050
  %1480 = vmatprep.subr.bf16.mxu0 %v1055
  %1481 = vmatpush1.bf16.msra.mxu0 %v1054
  %1482 = vmatprep.subr.bf16.mxu0 %v1059
  %1483 = vmatpush1.bf16.msra.mxu0 %v1058
  %1484 = vmatprep.subr.bf16.mxu0 %v1063
  %1485 = vmatpush1.bf16.msra.mxu0 %v1062
  %1486 = vmatprep.subr.bf16.mxu0 %v1067
  %1487 = vmatpush1.bf16.msra.mxu0 %v1066
  %1488 = vmatprep.subr.bf16.mxu0 %v1071
  %1489 = vmatpush1.bf16.msra.mxu0 %v1070
  %1490 = vmatprep.mubr.bf16.mxu0 %v325
  %1491 = vmatmul.mubr.bf16.gmra.mrb[0].mxu0 %v324
  %v1492 = vpop.f32.mrb[0].mxu0
  %v1493 = vadd.f32 %v296, %v1492
  %v1494 = vpop.f32.mrb[0].mxu0
  %v1495 = vadd.f32 %v300, %v1494
  %v1496 = vpop.f32.mrb[0].mxu0
  %v1497 = vpop.f32.mrb[0].mxu0
  %1498 = vdwg.mxu0
  %1499 = vmatprep.subr.bf16.mxu0 %v1075
  %1500 = vmatpush1.bf16.msra.mxu0 %v1074
  %1501 = vmatprep.subr.bf16.mxu0 %v1079
  %1502 = vmatpush1.bf16.msra.mxu0 %v1078
  %1503 = vmatprep.subr.bf16.mxu0 %v1083
  %1504 = vmatpush1.bf16.msra.mxu0 %v1082
  %1505 = vmatprep.subr.bf16.mxu0 %v1087
  %1506 = vmatpush1.bf16.msra.mxu0 %v1086
  %1507 = vmatprep.subr.bf16.mxu0 %v1091
  %1508 = vmatpush1.bf16.msra.mxu0 %v1090
  %1509 = vmatprep.subr.bf16.mxu0 %v1095
  %1510 = vmatpush1.bf16.msra.mxu0 %v1094
  %1511 = vmatprep.subr.bf16.mxu0 %v1099
  %1512 = vmatpush1.bf16.msra.mxu0 %v1098
  %1513 = vmatprep.subr.bf16.mxu0 %v1103
  %1514 = vmatpush1.bf16.msra.mxu0 %v1102
  %1515 = vmatprep.subr.bf16.mxu0 %v1107
  %1516 = vmatpush1.bf16.msra.mxu0 %v1106
  %1517 = vmatprep.subr.bf16.mxu0 %v1111
  %1518 = vmatpush1.bf16.msra.mxu0 %v1110
  %1519 = vmatprep.subr.bf16.mxu0 %v1115
  %1520 = vmatpush1.bf16.msra.mxu0 %v1114
  %1521 = vmatprep.subr.bf16.mxu0 %v1119
  %1522 = vmatpush1.bf16.msra.mxu0 %v1118
  %1523 = vmatprep.subr.bf16.mxu0 %v1123
  %1524 = vmatpush1.bf16.msra.mxu0 %v1122
  %1525 = vmatprep.subr.bf16.mxu0 %v1127
  %1526 = vmatpush1.bf16.msra.mxu0 %v1126
  %1527 = vmatprep.subr.bf16.mxu0 %v1131
  %1528 = vmatpush1.bf16.msra.mxu0 %v1130
  %1529 = vmatprep.subr.bf16.mxu0 %v1135
  %1530 = vmatpush1.bf16.msra.mxu0 %v1134
  %1531 = vmatprep.mubr.bf16.mxu0 %v327
  %1532 = vmatmul.mubr.bf16.gmra.mrb[0].mxu0 %v326
  %v1533 = vpop.f32.mrb[0].mxu0
  %v1534 = vadd.f32 %v1493, %v1533
  %v1535 = vpop.f32.mrb[0].mxu0
  %v1536 = vadd.f32 %v1495, %v1535
  %v1537 = vpop.f32.mrb[0].mxu0
  %v1538 = vpop.f32.mrb[0].mxu0
  %1539 = vdwg.mxu0
  %1540 = vmatprep.subr.bf16.mxu0 %v1139
  %1541 = vmatpush1.bf16.msra.mxu0 %v1138
  %1542 = vmatprep.subr.bf16.mxu0 %v1143
  %1543 = vmatpush1.bf16.msra.mxu0 %v1142
  %1544 = vmatprep.subr.bf16.mxu0 %v1147
  %1545 = vmatpush1.bf16.msra.mxu0 %v1146
  %1546 = vmatprep.subr.bf16.mxu0 %v1151
  %1547 = vmatpush1.bf16.msra.mxu0 %v1150
  %1548 = vmatprep.subr.bf16.mxu0 %v1155
  %1549 = vmatpush1.bf16.msra.mxu0 %v1154
  %1550 = vmatprep.subr.bf16.mxu0 %v1159
  %1551 = vmatpush1.bf16.msra.mxu0 %v1158
  %1552 = vmatprep.subr.bf16.mxu0 %v1163
  %1553 = vmatpush1.bf16.msra.mxu0 %v1162
  %1554 = vmatprep.subr.bf16.mxu0 %v1167
  %1555 = vmatpush1.bf16.msra.mxu0 %v1166
  %1556 = vmatprep.subr.bf16.mxu0 %v1171
  %1557 = vmatpush1.bf16.msra.mxu0 %v1170
  %1558 = vmatprep.subr.bf16.mxu0 %v1175
  %1559 = vmatpush1.bf16.msra.mxu0 %v1174
  %1560 = vmatprep.subr.bf16.mxu0 %v1179
  %1561 = vmatpush1.bf16.msra.mxu0 %v1178
  %1562 = vmatprep.subr.bf16.mxu0 %v1183
  %1563 = vmatpush1.bf16.msra.mxu0 %v1182
  %1564 = vmatprep.subr.bf16.mxu0 %v1187
  %1565 = vmatpush1.bf16.msra.mxu0 %v1186
  %1566 = vmatprep.subr.bf16.mxu0 %v1191
  %1567 = vmatpush1.bf16.msra.mxu0 %v1190
  %1568 = vmatprep.subr.bf16.mxu0 %v1195
  %1569 = vmatpush1.bf16.msra.mxu0 %v1194
  %1570 = vmatprep.subr.bf16.mxu0 %v1199
  %1571 = vmatpush1.bf16.msra.mxu0 %v1198
  %1572 = vmatprep.mubr.bf16.mxu0 %v329
  %1573 = vmatmul.mubr.bf16.gmra.mrb[0].mxu0 %v328
  %v1574 = vpop.f32.mrb[0].mxu0
  %v1575 = vadd.f32 %v1534, %v1574
  %v1576 = vpop.f32.mrb[0].mxu0
  %v1577 = vadd.f32 %v1536, %v1576
  %v1578 = vpop.f32.mrb[0].mxu0
  %v1579 = vpop.f32.mrb[0].mxu0
  %1580 = vdwg.mxu0
  %1581 = vmatprep.subr.bf16.mxu0 %v1203
  %1582 = vmatpush1.bf16.msra.mxu0 %v1202
  %1583 = vmatprep.subr.bf16.mxu0 %v1207
  %1584 = vmatpush1.bf16.msra.mxu0 %v1206
  %1585 = vmatprep.subr.bf16.mxu0 %v1211
  %1586 = vmatpush1.bf16.msra.mxu0 %v1210
  %1587 = vmatprep.subr.bf16.mxu0 %v1215
  %1588 = vmatpush1.bf16.msra.mxu0 %v1214
  %1589 = vmatprep.subr.bf16.mxu0 %v1219
  %1590 = vmatpush1.bf16.msra.mxu0 %v1218
  %1591 = vmatprep.subr.bf16.mxu0 %v1223
  %1592 = vmatpush1.bf16.msra.mxu0 %v1222
  %1593 = vmatprep.subr.bf16.mxu0 %v1227
  %1594 = vmatpush1.bf16.msra.mxu0 %v1226
  %1595 = vmatprep.subr.bf16.mxu0 %v1231
  %1596 = vmatpush1.bf16.msra.mxu0 %v1230
  %1597 = vmatprep.subr.bf16.mxu0 0
  %1598 = vmatpush1.bf16.msra.mxu0 0
  %1599 = vmatprep.subr.bf16.mxu0 0
  %1600 = vmatpush1.bf16.msra.mxu0 0
  %1601 = vmatprep.subr.bf16.mxu0 0
  %1602 = vmatpush1.bf16.msra.mxu0 0
  %1603 = vmatprep.subr.bf16.mxu0 0
  %1604 = vmatpush1.bf16.msra.mxu0 0
  %1605 = vmatprep.subr.bf16.mxu0 0
  %1606 = vmatpush1.bf16.msra.mxu0 0
  %1607 = vmatprep.subr.bf16.mxu0 0
  %1608 = vmatpush1.bf16.msra.mxu0 0
  %1609 = vmatprep.subr.bf16.mxu0 0
  %1610 = vmatpush1.bf16.msra.mxu0 0
  %1611 = vmatprep.subr.bf16.mxu0 0
  %1612 = vmatpush1.bf16.msra.mxu0 0
  %1613 = vmatprep.mubr.bf16.mxu0 0
  %1614 = vmatmul.mubr.bf16.gmra.mrb[0].mxu0 %v330
  %v1615 = vpop.f32.mrb[0].mxu0
  %v1616 = vadd.f32 %v1575, %v1615
  %v1617 = vpop.f32.mrb[0].mxu0
  %v1618 = vadd.f32 %v1577, %v1617
  %v1619 = vpop.f32.mrb[0].mxu0
  %v1620 = vpop.f32.mrb[0].mxu0
  %1621 = vdwg.mxu0
  %1622 = vmatprep.subr.bf16.mxu0 %v1013
  %1623 = vmatpush1.bf16.msra.mxu0 %v1012
  %1624 = vmatprep.subr.bf16.mxu0 %v1017
  %1625 = vmatpush1.bf16.msra.mxu0 %v1016
  %1626 = vmatprep.subr.bf16.mxu0 %v1021
  %1627 = vmatpush1.bf16.msra.mxu0 %v1020
  %1628 = vmatprep.subr.bf16.mxu0 %v1025
  %1629 = vmatpush1.bf16.msra.mxu0 %v1024
  %1630 = vmatprep.subr.bf16.mxu0 %v1029
  %1631 = vmatpush1.bf16.msra.mxu0 %v1028
  %1632 = vmatprep.subr.bf16.mxu0 %v1033
  %1633 = vmatpush1.bf16.msra.mxu0 %v1032
  %1634 = vmatprep.subr.bf16.mxu0 %v1037
  %1635 = vmatpush1.bf16.msra.mxu0 %v1036
  %1636 = vmatprep.subr.bf16.mxu0 %v1041
  %1637 = vmatpush1.bf16.msra.mxu0 %v1040
  %1638 = vmatprep.subr.bf16.mxu0 %v1045
  %1639 = vmatpush1.bf16.msra.mxu0 %v1044
  %1640 = vmatprep.subr.bf16.mxu0 %v1049
  %1641 = vmatpush1.bf16.msra.mxu0 %v1048
  %1642 = vmatprep.subr.bf16.mxu0 %v1053
  %1643 = vmatpush1.bf16.msra.mxu0 %v1052
  %1644 = vmatprep.subr.bf16.mxu0 %v1057
  %1645 = vmatpush1.bf16.msra.mxu0 %v1056
  %1646 = vmatprep.subr.bf16.mxu0 %v1061
  %1647 = vmatpush1.bf16.msra.mxu0 %v1060
  %1648 = vmatprep.subr.bf16.mxu0 %v1065
  %1649 = vmatpush1.bf16.msra.mxu0 %v1064
  %1650 = vmatprep.subr.bf16.mxu0 %v1069
  %1651 = vmatpush1.bf16.msra.mxu0 %v1068
  %1652 = vmatprep.subr.bf16.mxu0 %v1073
  %1653 = vmatpush1.bf16.msra.mxu0 %v1072
  %1654 = vmatprep.mubr.bf16.mxu0 %v325
  %1655 = vmatmul.mubr.bf16.gmra.mrb[0].mxu0 %v324
  %v1656 = vpop.f32.mrb[0].mxu0
  %v1657 = vadd.f32 %v304, %v1656
  %v1658 = vpop.f32.mrb[0].mxu0
  %v1659 = vadd.f32 %v308, %v1658
  %v1660 = vpop.f32.mrb[0].mxu0
  %v1661 = vpop.f32.mrb[0].mxu0
  %1662 = vdwg.mxu0
  %1663 = vmatprep.subr.bf16.mxu0 %v1077
  %1664 = vmatpush1.bf16.msra.mxu0 %v1076
  %1665 = vmatprep.subr.bf16.mxu0 %v1081
  %1666 = vmatpush1.bf16.msra.mxu0 %v1080
  %1667 = vmatprep.subr.bf16.mxu0 %v1085
  %1668 = vmatpush1.bf16.msra.mxu0 %v1084
  %1669 = vmatprep.subr.bf16.mxu0 %v1089
  %1670 = vmatpush1.bf16.msra.mxu0 %v1088
  %1671 = vmatprep.subr.bf16.mxu0 %v1093
  %1672 = vmatpush1.bf16.msra.mxu0 %v1092
  %1673 = vmatprep.subr.bf16.mxu0 %v1097
  %1674 = vmatpush1.bf16.msra.mxu0 %v1096
  %1675 = vmatprep.subr.bf16.mxu0 %v1101
  %1676 = vmatpush1.bf16.msra.mxu0 %v1100
  %1677 = vmatprep.subr.bf16.mxu0 %v1105
  %1678 = vmatpush1.bf16.msra.mxu0 %v1104
  %1679 = vmatprep.subr.bf16.mxu0 %v1109
  %1680 = vmatpush1.bf16.msra.mxu0 %v1108
  %1681 = vmatprep.subr.bf16.mxu0 %v1113
  %1682 = vmatpush1.bf16.msra.mxu0 %v1112
  %1683 = vmatprep.subr.bf16.mxu0 %v1117
  %1684 = vmatpush1.bf16.msra.mxu0 %v1116
  %1685 = vmatprep.subr.bf16.mxu0 %v1121
  %1686 = vmatpush1.bf16.msra.mxu0 %v1120
  %1687 = vmatprep.subr.bf16.mxu0 %v1125
  %1688 = vmatpush1.bf16.msra.mxu0 %v1124
  %1689 = vmatprep.subr.bf16.mxu0 %v1129
  %1690 = vmatpush1.bf16.msra.mxu0 %v1128
  %1691 = vmatprep.subr.bf16.mxu0 %v1133
  %1692 = vmatpush1.bf16.msra.mxu0 %v1132
  %1693 = vmatprep.subr.bf16.mxu0 %v1137
  %1694 = vmatpush1.bf16.msra.mxu0 %v1136
  %1695 = vmatprep.mubr.bf16.mxu0 %v327
  %1696 = vmatmul.mubr.bf16.gmra.mrb[0].mxu0 %v326
  %v1697 = vpop.f32.mrb[0].mxu0
  %v1698 = vadd.f32 %v1657, %v1697
  %v1699 = vpop.f32.mrb[0].mxu0
  %v1700 = vadd.f32 %v1659, %v1699
  %v1701 = vpop.f32.mrb[0].mxu0
  %v1702 = vpop.f32.mrb[0].mxu0
  %1703 = vdwg.mxu0
  %1704 = vmatprep.subr.bf16.mxu0 %v1141
  %1705 = vmatpush1.bf16.msra.mxu0 %v1140
  %1706 = vmatprep.subr.bf16.mxu0 %v1145
  %1707 = vmatpush1.bf16.msra.mxu0 %v1144
  %1708 = vmatprep.subr.bf16.mxu0 %v1149
  %1709 = vmatpush1.bf16.msra.mxu0 %v1148
  %1710 = vmatprep.subr.bf16.mxu0 %v1153
  %1711 = vmatpush1.bf16.msra.mxu0 %v1152
  %1712 = vmatprep.subr.bf16.mxu0 %v1157
  %1713 = vmatpush1.bf16.msra.mxu0 %v1156
  %1714 = vmatprep.subr.bf16.mxu0 %v1161
  %1715 = vmatpush1.bf16.msra.mxu0 %v1160
  %1716 = vmatprep.subr.bf16.mxu0 %v1165
  %1717 = vmatpush1.bf16.msra.mxu0 %v1164
  %1718 = vmatprep.subr.bf16.mxu0 %v1169
  %1719 = vmatpush1.bf16.msra.mxu0 %v1168
  %1720 = vmatprep.subr.bf16.mxu0 %v1173
  %1721 = vmatpush1.bf16.msra.mxu0 %v1172
  %1722 = vmatprep.subr.bf16.mxu0 %v1177
  %1723 = vmatpush1.bf16.msra.mxu0 %v1176
  %1724 = vmatprep.subr.bf16.mxu0 %v1181
  %1725 = vmatpush1.bf16.msra.mxu0 %v1180
  %1726 = vmatprep.subr.bf16.mxu0 %v1185
  %1727 = vmatpush1.bf16.msra.mxu0 %v1184
  %1728 = vmatprep.subr.bf16.mxu0 %v1189
  %1729 = vmatpush1.bf16.msra.mxu0 %v1188
  %1730 = vmatprep.subr.bf16.mxu0 %v1193
  %1731 = vmatpush1.bf16.msra.mxu0 %v1192
  %1732 = vmatprep.subr.bf16.mxu0 %v1197
  %1733 = vmatpush1.bf16.msra.mxu0 %v1196
  %1734 = vmatprep.subr.bf16.mxu0 %v1201
  %1735 = vmatpush1.bf16.msra.mxu0 %v1200
  %1736 = vmatprep.mubr.bf16.mxu0 %v329
  %1737 = vmatmul.mubr.bf16.gmra.mrb[0].mxu0 %v328
  %v1738 = vpop.f32.mrb[0].mxu0
  %v1739 = vadd.f32 %v1698, %v1738
  %v1740 = vpop.f32.mrb[0].mxu0
  %v1741 = vadd.f32 %v1700, %v1740
  %v1742 = vpop.f32.mrb[0].mxu0
  %v1743 = vpop.f32.mrb[0].mxu0
  %1744 = vdwg.mxu0
  %1745 = vmatprep.subr.bf16.mxu0 %v1205
  %1746 = vmatpush1.bf16.msra.mxu0 %v1204
  %1747 = vmatprep.subr.bf16.mxu0 %v1209
  %1748 = vmatpush1.bf16.msra.mxu0 %v1208
  %1749 = vmatprep.subr.bf16.mxu0 %v1213
  %1750 = vmatpush1.bf16.msra.mxu0 %v1212
  %1751 = vmatprep.subr.bf16.mxu0 %v1217
  %1752 = vmatpush1.bf16.msra.mxu0 %v1216
  %1753 = vmatprep.subr.bf16.mxu0 %v1221
  %1754 = vmatpush1.bf16.msra.mxu0 %v1220
  %1755 = vmatprep.subr.bf16.mxu0 %v1225
  %1756 = vmatpush1.bf16.msra.mxu0 %v1224
  %1757 = vmatprep.subr.bf16.mxu0 %v1229
  %1758 = vmatpush1.bf16.msra.mxu0 %v1228
  %1759 = vmatprep.subr.bf16.mxu0 %v1233
  %1760 = vmatpush1.bf16.msra.mxu0 %v1232
  %1761 = vmatprep.subr.bf16.mxu0 0
  %1762 = vmatpush1.bf16.msra.mxu0 0
  %1763 = vmatprep.subr.bf16.mxu0 0
  %1764 = vmatpush1.bf16.msra.mxu0 0
  %1765 = vmatprep.subr.bf16.mxu0 0
  %1766 = vmatpush1.bf16.msra.mxu0 0
  %1767 = vmatprep.subr.bf16.mxu0 0
  %1768 = vmatpush1.bf16.msra.mxu0 0
  %1769 = vmatprep.subr.bf16.mxu0 0
  %1770 = vmatpush1.bf16.msra.mxu0 0
  %1771 = vmatprep.subr.bf16.mxu0 0
  %1772 = vmatpush1.bf16.msra.mxu0 0
  %1773 = vmatprep.subr.bf16.mxu0 0
  %1774 = vmatpush1.bf16.msra.mxu0 0
  %1775 = vmatprep.subr.bf16.mxu0 0
  %1776 = vmatpush1.bf16.msra.mxu0 0
  %1777 = vmatprep.mubr.bf16.mxu0 0
  %1778 = vmatmul.mubr.bf16.gmra.mrb[0].mxu0 %v330
  %v1779 = vpop.f32.mrb[0].mxu0
  %v1780 = vadd.f32 %v1739, %v1779
  %v1781 = vpop.f32.mrb[0].mxu0
  %v1782 = vadd.f32 %v1741, %v1781
  %v1783 = vpop.f32.mrb[0].mxu0
  %v1784 = vpop.f32.mrb[0].mxu0
  %1785 = vdwg.mxu0
  %v1786 = vmax.f32 %v1616, 0.0
  %v1787 = vmax.f32 %v1618, 0.0
  %v1788 = vmax.f32 %v1780, 0.0
  %v1789 = vmax.f32 %v1782, 0.0
  %v1790 = vld [vmem:[%s3] sm:$0xff]
  %v1791 = vld [vmem:[%s3 + $0x8] sm:$0xff]
  %v1792 = vld [vmem:[%s3 + $0x10] sm:$0xff]
  %v1793 = vld [vmem:[%s3 + $0x18] sm:$0xff]
  %v1794 = vld [vmem:[%s3 + $0x20] sm:$0xff]
  %v1795 = vld [vmem:[%s3 + $0x28] sm:$0xff]
  %v1796 = vld [vmem:[%s3 + $0x30] sm:$0xff]
  %v1797 = vld [vmem:[%s3 + $0x38] sm:$0xff]
  %v1798 = vld [vmem:[%s3 + $0x40] sm:$0xff]
  %v1799 = vld [vmem:[%s3 + $0x48] sm:$0xff]
  %v1800 = vld [vmem:[%s3 + $0x50] sm:$0xff]
  %v1801 = vld [vmem:[%s3 + $0x58] sm:$0xff]
  %v1802 = vld [vmem:[%s3 + $0x60] sm:$0xff]
  %v1803 = vld [vmem:[%s3 + $0x68] sm:$0xff]
  %v1804 = vld [vmem:[%s3 + $0x70] sm:$0xff]
  %v1805 = vld [vmem:[%s3 + $0x78] sm:$0xff]
  %v1806 = vld [vmem:[%s3 + $0x80] sm:$0xff]
  %v1807 = vld [vmem:[%s3 + $0x88] sm:$0xff]
  %v1808 = vld [vmem:[%s3 + $0x90] sm:$0xff]
  %v1809 = vld [vmem:[%s3 + $0x98] sm:$0xff]
  %v1810 = vld [vmem:[%s3 + $0xa0] sm:$0xff]
  %v1811 = vld [vmem:[%s3 + $0xa8] sm:$0xff]
  %v1812 = vld [vmem:[%s3 + $0xb0] sm:$0xff]
  %v1813 = vld [vmem:[%s3 + $0xb8] sm:$0xff]
  %v1814 = vld [vmem:[%s3 + $0xc0] sm:$0xff]
  %v1815 = vld [vmem:[%s3 + $0xc8] sm:$0xff]
  %v1816 = vld [vmem:[%s3 + $0xd0] sm:$0xff]
  %v1817 = vld [vmem:[%s3 + $0xd8] sm:$0xff]
  %v1818 = vld [vmem:[%s3 + $0xe0] sm:$0xff]
  %v1819 = vld [vmem:[%s3 + $0xe8] sm:$0xff]
  %v1820 = vld [vmem:[%s3 + $0xf0] sm:$0xff]
  %v1821 = vld [vmem:[%s3 + $0xf8] sm:$0xff]
  %v1822 = vld [vmem:[%s3 + $0x100] sm:$0xff]
  %v1823 = vld [vmem:[%s3 + $0x108] sm:$0xff]
  %v1824 = vld [vmem:[%s3 + $0x110] sm:$0xff]
  %v1825 = vld [vmem:[%s3 + $0x118] sm:$0xff]
  %v1826 = vld [vmem:[%s3 + $0x120] sm:$0xff]
  %v1827 = vld [vmem:[%s3 + $0x128] sm:$0xff]
  %v1828 = vld [vmem:[%s3 + $0x130] sm:$0xff]
  %v1829 = vld [vmem:[%s3 + $0x138] sm:$0xff]
  %v1830 = vld [vmem:[%s3 + $0x140] sm:$0xff]
  %v1831 = vld [vmem:[%s3 + $0x148] sm:$0xff]
  %v1832 = vld [vmem:[%s3 + $0x150] sm:$0xff]
  %v1833 = vld [vmem:[%s3 + $0x158] sm:$0xff]
  %v1834 = vld [vmem:[%s3 + $0x160] sm:$0xff]
  %v1835 = vld [vmem:[%s3 + $0x168] sm:$0xff]
  %v1836 = vld [vmem:[%s3 + $0x170] sm:$0xff]
  %v1837 = vld [vmem:[%s3 + $0x178] sm:$0xff]
  %v1838 = vld [vmem:[%s3 + $0x180] sm:$0xff]
  %v1839 = vld [vmem:[%s3 + $0x188] sm:$0xff]
  %v1840 = vld [vmem:[%s3 + $0x190] sm:$0xff]
  %v1841 = vld [vmem:[%s3 + $0x198] sm:$0xff]
  %v1842 = vld [vmem:[%s3 + $0x1a0] sm:$0xff]
  %v1843 = vld [vmem:[%s3 + $0x1a8] sm:$0xff]
  %v1844 = vld [vmem:[%s3 + $0x1b0] sm:$0xff]
  %v1845 = vld [vmem:[%s3 + $0x1b8] sm:$0xff]
  %v1846 = vld [vmem:[%s3 + $0x1c0] sm:$0xff]
  %v1847 = vld [vmem:[%s3 + $0x1c8] sm:$0xff]
  %v1848 = vld [vmem:[%s3 + $0x1d0] sm:$0xff]
  %v1849 = vld [vmem:[%s3 + $0x1d8] sm:$0xff]
  %v1850 = vld [vmem:[%s3 + $0x1e0] sm:$0xff]
  %v1851 = vld [vmem:[%s3 + $0x1e8] sm:$0xff]
  %v1852 = vld [vmem:[%s3 + $0x1f0] sm:$0xff]
  %v1853 = vld [vmem:[%s3 + $0x1f8] sm:$0xff]
  %v1854 = vld [vmem:[%s4] sm:$0x3]
  %v1855 = vpack.c.bf16 %v1786, %v1786
  %v1856 = vpack.c.bf16 %v1787, %v1787
  %v1857 = vpack.c.bf16 %v1788, %v1788
  %v1858 = vpack.c.bf16 %v1789, %v1789
  %v1860 = vlaneseq
  %v1861 = vshrl.u32 %v1860, 7
  %v1862 = vsub.s32 0, %v1861
  %v1863 = vrot.slane %v1854, %v1862
  %v1864 = vlaneseq
  %v1865 = vshrl.u32 %v1864, 7
  %v1866 = vsub.s32 1, %v1865
  %v1867 = vrot.slane %v1854, %v1866
  %v1934 = vunpack.c.l.b16 %v1790
  %v1935 = vunpack.c.h.b16 %v1790
  %v1936 = vunpack.c.l.b16 %v1791
  %v1937 = vunpack.c.h.b16 %v1791
  %v1938 = vunpack.c.l.b16 %v1792
  %v1939 = vunpack.c.h.b16 %v1792
  %v1940 = vunpack.c.l.b16 %v1793
  %v1941 = vunpack.c.h.b16 %v1793
  %v1942 = vunpack.c.l.b16 %v1794
  %v1943 = vunpack.c.h.b16 %v1794
  %v1944 = vunpack.c.l.b16 %v1795
  %v1945 = vunpack.c.h.b16 %v1795
  %v1946 = vunpack.c.l.b16 %v1796
  %v1947 = vunpack.c.h.b16 %v1796
  %v1948 = vunpack.c.l.b16 %v1797
  %v1949 = vunpack.c.h.b16 %v1797
  %v1950 = vunpack.c.l.b16 %v1798
  %v1951 = vunpack.c.h.b16 %v1798
  %v1952 = vunpack.c.l.b16 %v1799
  %v1953 = vunpack.c.h.b16 %v1799
  %v1954 = vunpack.c.l.b16 %v1800
  %v1955 = vunpack.c.h.b16 %v1800
  %v1956 = vunpack.c.l.b16 %v1801
  %v1957 = vunpack.c.h.b16 %v1801
  %v1958 = vunpack.c.l.b16 %v1802
  %v1959 = vunpack.c.h.b16 %v1802
  %v1960 = vunpack.c.l.b16 %v1803
  %v1961 = vunpack.c.h.b16 %v1803
  %v1962 = vunpack.c.l.b16 %v1804
  %v1963 = vunpack.c.h.b16 %v1804
  %v1964 = vunpack.c.l.b16 %v1805
  %v1965 = vunpack.c.h.b16 %v1805
  %v1966 = vunpack.c.l.b16 %v1806
  %v1967 = vunpack.c.h.b16 %v1806
  %v1968 = vunpack.c.l.b16 %v1807
  %v1969 = vunpack.c.h.b16 %v1807
  %v1970 = vunpack.c.l.b16 %v1808
  %v1971 = vunpack.c.h.b16 %v1808
  %v1972 = vunpack.c.l.b16 %v1809
  %v1973 = vunpack.c.h.b16 %v1809
  %v1974 = vunpack.c.l.b16 %v1810
  %v1975 = vunpack.c.h.b16 %v1810
  %v1976 = vunpack.c.l.b16 %v1811
  %v1977 = vunpack.c.h.b16 %v1811
  %v1978 = vunpack.c.l.b16 %v1812
  %v1979 = vunpack.c.h.b16 %v1812
  %v1980 = vunpack.c.l.b16 %v1813
  %v1981 = vunpack.c.h.b16 %v1813
  %v1982 = vunpack.c.l.b16 %v1814
  %v1983 = vunpack.c.h.b16 %v1814
  %v1984 = vunpack.c.l.b16 %v1815
  %v1985 = vunpack.c.h.b16 %v1815
  %v1986 = vunpack.c.l.b16 %v1816
  %v1987 = vunpack.c.h.b16 %v1816
  %v1988 = vunpack.c.l.b16 %v1817
  %v1989 = vunpack.c.h.b16 %v1817
  %v1990 = vunpack.c.l.b16 %v1818
  %v1991 = vunpack.c.h.b16 %v1818
  %v1992 = vunpack.c.l.b16 %v1819
  %v1993 = vunpack.c.h.b16 %v1819
  %v1994 = vunpack.c.l.b16 %v1820
  %v1995 = vunpack.c.h.b16 %v1820
  %v1996 = vunpack.c.l.b16 %v1821
  %v1997 = vunpack.c.h.b16 %v1821
  %v1998 = vunpack.c.l.b16 %v1822
  %v1999 = vunpack.c.h.b16 %v1822
  %v2000 = vunpack.c.l.b16 %v1823
  %v2001 = vunpack.c.h.b16 %v1823
  %v2002 = vunpack.c.l.b16 %v1824
  %v2003 = vunpack.c.h.b16 %v1824
  %v2004 = vunpack.c.l.b16 %v1825
  %v2005 = vunpack.c.h.b16 %v1825
  %v2006 = vunpack.c.l.b16 %v1826
  %v2007 = vunpack.c.h.b16 %v1826
  %v2008 = vunpack.c.l.b16 %v1827
  %v2009 = vunpack.c.h.b16 %v1827
  %v2010 = vunpack.c.l.b16 %v1828
  %v2011 = vunpack.c.h.b16 %v1828
  %v2012 = vunpack.c.l.b16 %v1829
  %v2013 = vunpack.c.h.b16 %v1829
  %v2014 = vunpack.c.l.b16 %v1830
  %v2015 = vunpack.c.h.b16 %v1830
  %v2016 = vunpack.c.l.b16 %v1831
  %v2017 = vunpack.c.h.b16 %v1831
  %v2018 = vunpack.c.l.b16 %v1832
  %v2019 = vunpack.c.h.b16 %v1832
  %v2020 = vunpack.c.l.b16 %v1833
  %v2021 = vunpack.c.h.b16 %v1833
  %v2022 = vunpack.c.l.b16 %v1834
  %v2023 = vunpack.c.h.b16 %v1834
  %v2024 = vunpack.c.l.b16 %v1835
  %v2025 = vunpack.c.h.b16 %v1835
  %v2026 = vunpack.c.l.b16 %v1836
  %v2027 = vunpack.c.h.b16 %v1836
  %v2028 = vunpack.c.l.b16 %v1837
  %v2029 = vunpack.c.h.b16 %v1837
  %v2030 = vunpack.c.l.b16 %v1838
  %v2031 = vunpack.c.h.b16 %v1838
  %v2032 = vunpack.c.l.b16 %v1839
  %v2033 = vunpack.c.h.b16 %v1839
  %v2034 = vunpack.c.l.b16 %v1840
  %v2035 = vunpack.c.h.b16 %v1840
  %v2036 = vunpack.c.l.b16 %v1841
  %v2037 = vunpack.c.h.b16 %v1841
  %v2038 = vunpack.c.l.b16 %v1842
  %v2039 = vunpack.c.h.b16 %v1842
  %v2040 = vunpack.c.l.b16 %v1843
  %v2041 = vunpack.c.h.b16 %v1843
  %v2042 = vunpack.c.l.b16 %v1844
  %v2043 = vunpack.c.h.b16 %v1844
  %v2044 = vunpack.c.l.b16 %v1845
  %v2045 = vunpack.c.h.b16 %v1845
  %v2046 = vunpack.c.l.b16 %v1846
  %v2047 = vunpack.c.h.b16 %v1846
  %v2048 = vunpack.c.l.b16 %v1847
  %v2049 = vunpack.c.h.b16 %v1847
  %v2050 = vunpack.c.l.b16 %v1848
  %v2051 = vunpack.c.h.b16 %v1848
  %v2052 = vunpack.c.l.b16 %v1849
  %v2053 = vunpack.c.h.b16 %v1849
  %v2054 = vunpack.c.l.b16 %v1850
  %v2055 = vunpack.c.h.b16 %v1850
  %v2056 = vunpack.c.l.b16 %v1851
  %v2057 = vunpack.c.h.b16 %v1851
  %v2058 = vunpack.c.l.b16 %v1852
  %v2059 = vunpack.c.h.b16 %v1852
  %v2060 = vunpack.c.l.b16 %v1853
  %v2061 = vunpack.c.h.b16 %v1853
  %v2062 = vpack.c.b16 %v1936, %v1934
  %v2063 = vpack.c.b16 %v1937, %v1935
  %v2064 = vpack.c.b16 %v1940, %v1938
  %v2065 = vpack.c.b16 %v1941, %v1939
  %v2066 = vpack.c.b16 %v1944, %v1942
  %v2067 = vpack.c.b16 %v1945, %v1943
  %v2068 = vpack.c.b16 %v1948, %v1946
  %v2069 = vpack.c.b16 %v1949, %v1947
  %v2070 = vpack.c.b16 %v1952, %v1950
  %v2071 = vpack.c.b16 %v1953, %v1951
  %v2072 = vpack.c.b16 %v1956, %v1954
  %v2073 = vpack.c.b16 %v1957, %v1955
  %v2074 = vpack.c.b16 %v1960, %v1958
  %v2075 = vpack.c.b16 %v1961, %v1959
  %v2076 = vpack.c.b16 %v1964, %v1962
  %v2077 = vpack.c.b16 %v1965, %v1963
  %v2078 = vpack.c.b16 %v1968, %v1966
  %v2079 = vpack.c.b16 %v1969, %v1967
  %v2080 = vpack.c.b16 %v1972, %v1970
  %v2081 = vpack.c.b16 %v1973, %v1971
  %v2082 = vpack.c.b16 %v1976, %v1974
  %v2083 = vpack.c.b16 %v1977, %v1975
  %v2084 = vpack.c.b16 %v1980, %v1978
  %v2085 = vpack.c.b16 %v1981, %v1979
  %v2086 = vpack.c.b16 %v1984, %v1982
  %v2087 = vpack.c.b16 %v1985, %v1983
  %v2088 = vpack.c.b16 %v1988, %v1986
  %v2089 = vpack.c.b16 %v1989, %v1987
  %v2090 = vpack.c.b16 %v1992, %v1990
  %v2091 = vpack.c.b16 %v1993, %v1991
  %v2092 = vpack.c.b16 %v1996, %v1994
  %v2093 = vpack.c.b16 %v1997, %v1995
  %v2094 = vpack.c.b16 %v2000, %v1998
  %v2095 = vpack.c.b16 %v2001, %v1999
  %v2096 = vpack.c.b16 %v2004, %v2002
  %v2097 = vpack.c.b16 %v2005, %v2003
  %v2098 = vpack.c.b16 %v2008, %v2006
  %v2099 = vpack.c.b16 %v2009, %v2007
  %v2100 = vpack.c.b16 %v2012, %v2010
  %v2101 = vpack.c.b16 %v2013, %v2011
  %v2102 = vpack.c.b16 %v2016, %v2014
  %v2103 = vpack.c.b16 %v2017, %v2015
  %v2104 = vpack.c.b16 %v2020, %v2018
  %v2105 = vpack.c.b16 %v2021, %v2019
  %v2106 = vpack.c.b16 %v2024, %v2022
  %v2107 = vpack.c.b16 %v2025, %v2023
  %v2108 = vpack.c.b16 %v2028, %v2026
  %v2109 = vpack.c.b16 %v2029, %v2027
  %v2110 = vpack.c.b16 %v2032, %v2030
  %v2111 = vpack.c.b16 %v2033, %v2031
  %v2112 = vpack.c.b16 %v2036, %v2034
  %v2113 = vpack.c.b16 %v2037, %v2035
  %v2114 = vpack.c.b16 %v2040, %v2038
  %v2115 = vpack.c.b16 %v2041, %v2039
  %v2116 = vpack.c.b16 %v2044, %v2042
  %v2117 = vpack.c.b16 %v2045, %v2043
  %v2118 = vpack.c.b16 %v2048, %v2046
  %v2119 = vpack.c.b16 %v2049, %v2047
  %v2120 = vpack.c.b16 %v2052, %v2050
  %v2121 = vpack.c.b16 %v2053, %v2051
  %v2122 = vpack.c.b16 %v2056, %v2054
  %v2123 = vpack.c.b16 %v2057, %v2055
  %v2124 = vpack.c.b16 %v2060, %v2058
  %v2125 = vpack.c.b16 %v2061, %v2059
  %2190 = vmatprep.subr.bf16.mxu0 %v2063
  %2191 = vmatpush1.bf16.msra.mxu0 %v2062
  %2192 = vmatprep.subr.bf16.mxu0 %v2065
  %2193 = vmatpush1.bf16.msra.mxu0 %v2064
  %2194 = vmatprep.subr.bf16.mxu0 %v2067
  %2195 = vmatpush1.bf16.msra.mxu0 %v2066
  %2196 = vmatprep.subr.bf16.mxu0 %v2069
  %2197 = vmatpush1.bf16.msra.mxu0 %v2068
  %2198 = vmatprep.subr.bf16.mxu0 %v2071
  %2199 = vmatpush1.bf16.msra.mxu0 %v2070
  %2200 = vmatprep.subr.bf16.mxu0 %v2073
  %2201 = vmatpush1.bf16.msra.mxu0 %v2072
  %2202 = vmatprep.subr.bf16.mxu0 %v2075
  %2203 = vmatpush1.bf16.msra.mxu0 %v2074
  %2204 = vmatprep.subr.bf16.mxu0 %v2077
  %2205 = vmatpush1.bf16.msra.mxu0 %v2076
  %2206 = vmatprep.subr.bf16.mxu0 %v2079
  %2207 = vmatpush1.bf16.msra.mxu0 %v2078
  %2208 = vmatprep.subr.bf16.mxu0 %v2081
  %2209 = vmatpush1.bf16.msra.mxu0 %v2080
  %2210 = vmatprep.subr.bf16.mxu0 %v2083
  %2211 = vmatpush1.bf16.msra.mxu0 %v2082
  %2212 = vmatprep.subr.bf16.mxu0 %v2085
  %2213 = vmatpush1.bf16.msra.mxu0 %v2084
  %2214 = vmatprep.subr.bf16.mxu0 %v2087
  %2215 = vmatpush1.bf16.msra.mxu0 %v2086
  %2216 = vmatprep.subr.bf16.mxu0 %v2089
  %2217 = vmatpush1.bf16.msra.mxu0 %v2088
  %2218 = vmatprep.subr.bf16.mxu0 %v2091
  %2219 = vmatpush1.bf16.msra.mxu0 %v2090
  %2220 = vmatprep.subr.bf16.mxu0 %v2093
  %2221 = vmatpush1.bf16.msra.mxu0 %v2092
  %2222 = vmatprep.mubr.bf16.mxu0 %v1856
  %2223 = vmatmul.mubr.bf16.gmra.mrb[0].mxu0 %v1855
  %v2224 = vpop.f32.mrb[0].mxu0
  %v2225 = vadd.f32 %v1863, %v2224
  %v2226 = vpop.f32.mrb[0].mxu0
  %v2227 = vadd.f32 %v1867, %v2226
  %v2228 = vpop.f32.mrb[0].mxu0
  %v2229 = vpop.f32.mrb[0].mxu0
  %2230 = vdwg.mxu0
  %2231 = vmatprep.subr.bf16.mxu0 %v2095
  %2232 = vmatpush1.bf16.msra.mxu0 %v2094
  %2233 = vmatprep.subr.bf16.mxu0 %v2097
  %2234 = vmatpush1.bf16.msra.mxu0 %v2096
  %2235 = vmatprep.subr.bf16.mxu0 %v2099
  %2236 = vmatpush1.bf16.msra.mxu0 %v2098
  %2237 = vmatprep.subr.bf16.mxu0 %v2101
  %2238 = vmatpush1.bf16.msra.mxu0 %v2100
  %2239 = vmatprep.subr.bf16.mxu0 %v2103
  %2240 = vmatpush1.bf16.msra.mxu0 %v2102
  %2241 = vmatprep.subr.bf16.mxu0 %v2105
  %2242 = vmatpush1.bf16.msra.mxu0 %v2104
  %2243 = vmatprep.subr.bf16.mxu0 %v2107
  %2244 = vmatpush1.bf16.msra.mxu0 %v2106
  %2245 = vmatprep.subr.bf16.mxu0 %v2109
  %2246 = vmatpush1.bf16.msra.mxu0 %v2108
  %2247 = vmatprep.subr.bf16.mxu0 %v2111
  %2248 = vmatpush1.bf16.msra.mxu0 %v2110
  %2249 = vmatprep.subr.bf16.mxu0 %v2113
  %2250 = vmatpush1.bf16.msra.mxu0 %v2112
  %2251 = vmatprep.subr.bf16.mxu0 %v2115
  %2252 = vmatpush1.bf16.msra.mxu0 %v2114
  %2253 = vmatprep.subr.bf16.mxu0 %v2117
  %2254 = vmatpush1.bf16.msra.mxu0 %v2116
  %2255 = vmatprep.subr.bf16.mxu0 %v2119
  %2256 = vmatpush1.bf16.msra.mxu0 %v2118
  %2257 = vmatprep.subr.bf16.mxu0 %v2121
  %2258 = vmatpush1.bf16.msra.mxu0 %v2120
  %2259 = vmatprep.subr.bf16.mxu0 %v2123
  %2260 = vmatpush1.bf16.msra.mxu0 %v2122
  %2261 = vmatprep.subr.bf16.mxu0 %v2125
  %2262 = vmatpush1.bf16.msra.mxu0 %v2124
  %2263 = vmatprep.mubr.bf16.mxu0 %v1858
  %2264 = vmatmul.mubr.bf16.gmra.mrb[0].mxu0 %v1857
  %v2265 = vpop.f32.mrb[0].mxu0
  %v2266 = vadd.f32 %v2225, %v2265
  %v2267 = vpop.f32.mrb[0].mxu0
  %v2268 = vadd.f32 %v2227, %v2267
  %v2269 = vpop.f32.mrb[0].mxu0
  %v2270 = vpop.f32.mrb[0].mxu0
  %2271 = vdwg.mxu0
  %v2272 = vmax.f32 %v2266, 0.0
  %v2273 = vmax.f32 %v2268, 0.0
  %v2274 = vld [vmem:[%s5] sm:$0xf]
  %v2275 = vld [vmem:[%s5 + $0x4] sm:$0xf]
  %v2276 = vld [vmem:[%s5 + $0x8] sm:$0xf]
  %v2277 = vld [vmem:[%s5 + $0xc] sm:$0xf]
  %v2278 = vld [vmem:[%s5 + $0x10] sm:$0xf]
  %v2279 = vld [vmem:[%s5 + $0x14] sm:$0xf]
  %v2280 = vld [vmem:[%s5 + $0x18] sm:$0xf]
  %v2281 = vld [vmem:[%s5 + $0x1c] sm:$0xf]
  %v2282 = vld [vmem:[%s5 + $0x20] sm:$0xf]
  %v2283 = vld [vmem:[%s5 + $0x24] sm:$0xf]
  %v2284 = vld [vmem:[%s5 + $0x28] sm:$0xf]
  %v2285 = vld [vmem:[%s5 + $0x2c] sm:$0xf]
  %v2286 = vld [vmem:[%s5 + $0x30] sm:$0xf]
  %v2287 = vld [vmem:[%s5 + $0x34] sm:$0xf]
  %v2288 = vld [vmem:[%s5 + $0x38] sm:$0xf]
  %v2289 = vld [vmem:[%s5 + $0x3c] sm:$0xf]
  %v2290 = vld [vmem:[%s5 + $0x40] sm:$0xf]
  %v2291 = vld [vmem:[%s5 + $0x44] sm:$0xf]
  %v2292 = vld [vmem:[%s5 + $0x48] sm:$0xf]
  %v2293 = vld [vmem:[%s5 + $0x4c] sm:$0xf]
  %v2294 = vld [vmem:[%s5 + $0x50] sm:$0xf]
  %v2295 = vld [vmem:[%s5 + $0x54] sm:$0xf]
  %v2296 = vld [vmem:[%s5 + $0x58] sm:$0xf]
  %v2297 = vld [vmem:[%s5 + $0x5c] sm:$0xf]
  %v2298 = vld [vmem:[%s5 + $0x60] sm:$0xf]
  %v2299 = vld [vmem:[%s5 + $0x64] sm:$0xf]
  %v2300 = vld [vmem:[%s5 + $0x68] sm:$0xf]
  %v2301 = vld [vmem:[%s5 + $0x6c] sm:$0xf]
  %v2302 = vld [vmem:[%s5 + $0x70] sm:$0xf]
  %v2303 = vld [vmem:[%s5 + $0x74] sm:$0xf]
  %v2304 = vld [vmem:[%s5 + $0x78] sm:$0xf]
  %v2305 = vld [vmem:[%s5 + $0x7c] sm:$0xf]
  %v2306 = vld [vmem:[%s6] sm:$0x1]
  %v2307 = vpack.c.bf16 %v2272, %v2272
  %v2308 = vpack.c.bf16 %v2273, %v2273
  %v2310 = vlaneseq
  %v2311 = vshrl.u32 %v2310, 7
  %v2312 = vsub.s32 0, %v2311
  %v2313 = vrot.slane %v2306, %v2312
  %v2347 = vunpack.c.l.b16 %v2274
  %v2348 = vunpack.c.l.b16 %v2275
  %v2349 = vunpack.c.l.b16 %v2276
  %v2350 = vunpack.c.l.b16 %v2277
  %v2351 = vunpack.c.l.b16 %v2278
  %v2352 = vunpack.c.l.b16 %v2279
  %v2353 = vunpack.c.l.b16 %v2280
  %v2354 = vunpack.c.l.b16 %v2281
  %v2355 = vunpack.c.l.b16 %v2282
  %v2356 = vunpack.c.l.b16 %v2283
  %v2357 = vunpack.c.l.b16 %v2284
  %v2358 = vunpack.c.l.b16 %v2285
  %v2359 = vunpack.c.l.b16 %v2286
  %v2360 = vunpack.c.l.b16 %v2287
  %v2361 = vunpack.c.l.b16 %v2288
  %v2362 = vunpack.c.l.b16 %v2289
  %v2363 = vunpack.c.l.b16 %v2290
  %v2364 = vunpack.c.l.b16 %v2291
  %v2365 = vunpack.c.l.b16 %v2292
  %v2366 = vunpack.c.l.b16 %v2293
  %v2367 = vunpack.c.l.b16 %v2294
  %v2368 = vunpack.c.l.b16 %v2295
  %v2369 = vunpack.c.l.b16 %v2296
  %v2370 = vunpack.c.l.b16 %v2297
  %v2371 = vunpack.c.l.b16 %v2298
  %v2372 = vunpack.c.l.b16 %v2299
  %v2373 = vunpack.c.l.b16 %v2300
  %v2374 = vunpack.c.l.b16 %v2301
  %v2375 = vunpack.c.l.b16 %v2302
  %v2376 = vunpack.c.l.b16 %v2303
  %v2377 = vunpack.c.l.b16 %v2304
  %v2378 = vunpack.c.l.b16 %v2305
  %v2379 = vpack.c.b16 %v2348, %v2347
  %v2380 = vpack.c.b16 %v2350, %v2349
  %v2381 = vpack.c.b16 %v2352, %v2351
  %v2382 = vpack.c.b16 %v2354, %v2353
  %v2383 = vpack.c.b16 %v2356, %v2355
  %v2384 = vpack.c.b16 %v2358, %v2357
  %v2385 = vpack.c.b16 %v2360, %v2359
  %v2386 = vpack.c.b16 %v2362, %v2361
  %v2387 = vpack.c.b16 %v2364, %v2363
  %v2388 = vpack.c.b16 %v2366, %v2365
  %v2389 = vpack.c.b16 %v2368, %v2367
  %v2390 = vpack.c.b16 %v2370, %v2369
  %v2391 = vpack.c.b16 %v2372, %v2371
  %v2392 = vpack.c.b16 %v2374, %v2373
  %v2393 = vpack.c.b16 %v2376, %v2375
  %v2394 = vpack.c.b16 %v2378, %v2377
  %2411 = vmatprep.subr.bf16.mxu0 0
  %2412 = vmatpush1.bf16.msra.mxu0 %v2379
  %2413 = vmatprep.subr.bf16.mxu0 0
  %2414 = vmatpush1.bf16.msra.mxu0 %v2380
  %2415 = vmatprep.subr.bf16.mxu0 0
  %2416 = vmatpush1.bf16.msra.mxu0 %v2381
  %2417 = vmatprep.subr.bf16.mxu0 0
  %2418 = vmatpush1.bf16.msra.mxu0 %v2382
  %2419 = vmatprep.subr.bf16.mxu0 0
  %2420 = vmatpush1.bf16.msra.mxu0 %v2383
  %2421 = vmatprep.subr.bf16.mxu0 0
  %2422 = vmatpush1.bf16.msra.mxu0 %v2384
  %2423 = vmatprep.subr.bf16.mxu0 0
  %2424 = vmatpush1.bf16.msra.mxu0 %v2385
  %2425 = vmatprep.subr.bf16.mxu0 0
  %2426 = vmatpush1.bf16.msra.mxu0 %v2386
  %2427 = vmatprep.subr.bf16.mxu0 0
  %2428 = vmatpush1.bf16.msra.mxu0 %v2387
  %2429 = vmatprep.subr.bf16.mxu0 0
  %2430 = vmatpush1.bf16.msra.mxu0 %v2388
  %2431 = vmatprep.subr.bf16.mxu0 0
  %2432 = vmatpush1.bf16.msra.mxu0 %v2389
  %2433 = vmatprep.subr.bf16.mxu0 0
  %2434 = vmatpush1.bf16.msra.mxu0 %v2390
  %2435 = vmatprep.subr.bf16.mxu0 0
  %2436 = vmatpush1.bf16.msra.mxu0 %v2391
  %2437 = vmatprep.subr.bf16.mxu0 0
  %2438 = vmatpush1.bf16.msra.mxu0 %v2392
  %2439 = vmatprep.subr.bf16.mxu0 0
  %2440 = vmatpush1.bf16.msra.mxu0 %v2393
  %2441 = vmatprep.subr.bf16.mxu0 0
  %2442 = vmatpush1.bf16.msra.mxu0 %v2394
  %2443 = vmatprep.mubr.bf16.mxu0 %v2308
  %2444 = vmatmul.mubr.bf16.gmra.mrb[0].mxu0 %v2307
  %v2445 = vpop.f32.mrb[0].mxu0
  %v2446 = vadd.f32 %v2313, %v2445
  %v2447 = vpop.f32.mrb[0].mxu0
  %v2448 = vpop.f32.mrb[0].mxu0
  %v2449 = vpop.f32.mrb[0].mxu0
  %2450 = vdwg.mxu0
  %v2451 = vmax.f32 %v2446, 0.0
  %v2452 = vld [vmem:[%s7] sm:$0xf]
  %v2453 = vld [vmem:[%s7 + $0x4] sm:$0xf]
  %v2454 = vld [vmem:[%s7 + $0x8] sm:$0xf]
  %v2455 = vld [vmem:[%s7 + $0xc] sm:$0xf]
  %v2456 = vld [vmem:[%s7 + $0x10] sm:$0xf]
  %v2457 = vld [vmem:[%s7 + $0x14] sm:$0xf]
  %v2458 = vld [vmem:[%s7 + $0x18] sm:$0xf]
  %v2459 = vld [vmem:[%s7 + $0x1c] sm:$0xf]
  %v2460 = vld [vmem:[%s7 + $0x20] sm:$0xf]
  %v2461 = vld [vmem:[%s7 + $0x24] sm:$0xf]
  %v2462 = vld [vmem:[%s7 + $0x28] sm:$0xf]
  %v2463 = vld [vmem:[%s7 + $0x2c] sm:$0xf]
  %v2464 = vld [vmem:[%s7 + $0x30] sm:$0xf]
  %v2465 = vld [vmem:[%s7 + $0x34] sm:$0xf]
  %v2466 = vld [vmem:[%s7 + $0x38] sm:$0xf]
  %v2467 = vld [vmem:[%s7 + $0x3c] sm:$0xf]
  %v2468 = vld [vmem:[%s8] sm:$0x1]
  %v2469 = vpack.c.bf16 %v2451, %v2451
  %v2471 = vlaneseq
  %v2472 = vshrl.u32 %v2471, 7
  %v2473 = vsub.s32 0, %v2472
  %v2474 = vrot.slane %v2468, %v2473
  %v2492 = vunpack.c.l.b16 %v2452
  %v2493 = vunpack.c.l.b16 %v2453
  %v2494 = vunpack.c.l.b16 %v2454
  %v2495 = vunpack.c.l.b16 %v2455
  %v2496 = vunpack.c.l.b16 %v2456
  %v2497 = vunpack.c.l.b16 %v2457
  %v2498 = vunpack.c.l.b16 %v2458
  %v2499 = vunpack.c.l.b16 %v2459
  %v2500 = vunpack.c.l.b16 %v2460
  %v2501 = vunpack.c.l.b16 %v2461
  %v2502 = vunpack.c.l.b16 %v2462
  %v2503 = vunpack.c.l.b16 %v2463
  %v2504 = vunpack.c.l.b16 %v2464
  %v2505 = vunpack.c.l.b16 %v2465
  %v2506 = vunpack.c.l.b16 %v2466
  %v2507 = vunpack.c.l.b16 %v2467
  %v2508 = vpack.c.b16 %v2493, %v2492
  %v2509 = vpack.c.b16 %v2495, %v2494
  %v2510 = vpack.c.b16 %v2497, %v2496
  %v2511 = vpack.c.b16 %v2499, %v2498
  %v2512 = vpack.c.b16 %v2501, %v2500
  %v2513 = vpack.c.b16 %v2503, %v2502
  %v2514 = vpack.c.b16 %v2505, %v2504
  %v2515 = vpack.c.b16 %v2507, %v2506
  %2524 = vmatprep.subr.bf16.mxu0 0
  %2525 = vmatpush1.bf16.msra.mxu0 %v2508
  %2526 = vmatprep.subr.bf16.mxu0 0
  %2527 = vmatpush1.bf16.msra.mxu0 %v2509
  %2528 = vmatprep.subr.bf16.mxu0 0
  %2529 = vmatpush1.bf16.msra.mxu0 %v2510
  %2530 = vmatprep.subr.bf16.mxu0 0
  %2531 = vmatpush1.bf16.msra.mxu0 %v2511
  %2532 = vmatprep.subr.bf16.mxu0 0
  %2533 = vmatpush1.bf16.msra.mxu0 %v2512
  %2534 = vmatprep.subr.bf16.mxu0 0
  %2535 = vmatpush1.bf16.msra.mxu0 %v2513
  %2536 = vmatprep.subr.bf16.mxu0 0
  %2537 = vmatpush1.bf16.msra.mxu0 %v2514
  %2538 = vmatprep.subr.bf16.mxu0 0
  %2539 = vmatpush1.bf16.msra.mxu0 %v2515
  %2540 = vmatprep.subr.bf16.mxu0 0
  %2541 = vmatpush1.bf16.msra.mxu0 0
  %2542 = vmatprep.subr.bf16.mxu0 0
  %2543 = vmatpush1.bf16.msra.mxu0 0
  %2544 = vmatprep.subr.bf16.mxu0 0
  %2545 = vmatpush1.bf16.msra.mxu0 0
  %2546 = vmatprep.subr.bf16.mxu0 0
  %2547 = vmatpush1.bf16.msra.mxu0 0
  %2548 = vmatprep.subr.bf16.mxu0 0
  %2549 = vmatpush1.bf16.msra.mxu0 0
  %2550 = vmatprep.subr.bf16.mxu0 0
  %2551 = vmatpush1.bf16.msra.mxu0 0
  %2552 = vmatprep.subr.bf16.mxu0 0
  %2553 = vmatpush1.bf16.msra.mxu0 0
  %2554 = vmatprep.subr.bf16.mxu0 0
  %2555 = vmatpush1.bf16.msra.mxu0 0
  %2556 = vmatprep.mubr.bf16.mxu0 0
  %2557 = vmatmul.mubr.bf16.gmra.mrb[0].mxu0 %v2469
  %v2558 = vpop.f32.mrb[0].mxu0
  %v2559 = vadd.f32 %v2474, %v2558
  %v2560 = vpop.f32.mrb[0].mxu0
  %v2561 = vpop.f32.mrb[0].mxu0
  %v2562 = vpop.f32.mrb[0].mxu0
  %2563 = vdwg.mxu0
  %v2564 = vmax.f32 %v2559, 0.0
  %v2565 = vld [vmem:[%s9] sm:$0xf]
  %v2566 = vld [vmem:[%s9 + $0x4] sm:$0xf]
  %v2567 = vld [vmem:[%s9 + $0x8] sm:$0xf]
  %v2568 = vld [vmem:[%s9 + $0xc] sm:$0xf]
  %v2569 = vld [vmem:[%s9 + $0x10] sm:$0xf]
  %v2570 = vld [vmem:[%s9 + $0x14] sm:$0xf]
  %v2571 = vld [vmem:[%s9 + $0x18] sm:$0xf]
  %v2572 = vld [vmem:[%s9 + $0x1c] sm:$0xf]
  %v2573 = vld [vmem:[%s9 + $0x20] sm:$0xf]
  %v2574 = vld [vmem:[%s9 + $0x24] sm:$0xf]
  %v2575 = vld [vmem:[%s9 + $0x28] sm:$0xf]
  %v2576 = vld [vmem:[%s9 + $0x2c] sm:$0xf]
  %v2577 = vld [vmem:[%s9 + $0x30] sm:$0xf]
  %v2578 = vld [vmem:[%s9 + $0x34] sm:$0xf]
  %v2579 = vld [vmem:[%s9 + $0x38] sm:$0xf]
  %v2580 = vld [vmem:[%s9 + $0x3c] sm:$0xf]
  %v2581 = vld [vmem:[%s10] sm:$0x1]
  %v2582 = vpack.c.bf16 %v2564, %v2564
  %v2584 = vlaneseq
  %v2585 = vshrl.u32 %v2584, 7
  %v2586 = vsub.s32 0, %v2585
  %v2587 = vrot.slane %v2581, %v2586
  %v2605 = vunpack.c.l.b16 %v2565
  %v2606 = vunpack.c.l.b16 %v2566
  %v2607 = vunpack.c.l.b16 %v2567
  %v2608 = vunpack.c.l.b16 %v2568
  %v2609 = vunpack.c.l.b16 %v2569
  %v2610 = vunpack.c.l.b16 %v2570
  %v2611 = vunpack.c.l.b16 %v2571
  %v2612 = vunpack.c.l.b16 %v2572
  %v2613 = vunpack.c.l.b16 %v2573
  %v2614 = vunpack.c.l.b16 %v2574
  %v2615 = vunpack.c.l.b16 %v2575
  %v2616 = vunpack.c.l.b16 %v2576
  %v2617 = vunpack.c.l.b16 %v2577
  %v2618 = vunpack.c.l.b16 %v2578
  %v2619 = vunpack.c.l.b16 %v2579
  %v2620 = vunpack.c.l.b16 %v2580
  %v2621 = vpack.c.b16 %v2606, %v2605
  %v2622 = vpack.c.b16 %v2608, %v2607
  %v2623 = vpack.c.b16 %v2610, %v2609
  %v2624 = vpack.c.b16 %v2612, %v2611
  %v2625 = vpack.c.b16 %v2614, %v2613
  %v2626 = vpack.c.b16 %v2616, %v2615
  %v2627 = vpack.c.b16 %v2618, %v2617
  %v2628 = vpack.c.b16 %v2620, %v2619
  %2637 = vmatprep.subr.bf16.mxu0 0
  %2638 = vmatpush1.bf16.msra.mxu0 %v2621
  %2639 = vmatprep.subr.bf16.mxu0 0
  %2640 = vmatpush1.bf16.msra.mxu0 %v2622
  %2641 = vmatprep.subr.bf16.mxu0 0
  %2642 = vmatpush1.bf16.msra.mxu0 %v2623
  %2643 = vmatprep.subr.bf16.mxu0 0
  %2644 = vmatpush1.bf16.msra.mxu0 %v2624
  %2645 = vmatprep.subr.bf16.mxu0 0
  %2646 = vmatpush1.bf16.msra.mxu0 %v2625
  %2647 = vmatprep.subr.bf16.mxu0 0
  %2648 = vmatpush1.bf16.msra.mxu0 %v2626
  %2649 = vmatprep.subr.bf16.mxu0 0
  %2650 = vmatpush1.bf16.msra.mxu0 %v2627
  %2651 = vmatprep.subr.bf16.mxu0 0
  %2652 = vmatpush1.bf16.msra.mxu0 %v2628
  %2653 = vmatprep.subr.bf16.mxu0 0
  %2654 = vmatpush1.bf16.msra.mxu0 0
  %2655 = vmatprep.subr.bf16.mxu0 0
  %2656 = vmatpush1.bf16.msra.mxu0 0
  %2657 = vmatprep.subr.bf16.mxu0 0
  %2658 = vmatpush1.bf16.msra.mxu0 0
  %2659 = vmatprep.subr.bf16.mxu0 0
  %2660 = vmatpush1.bf16.msra.mxu0 0
  %2661 = vmatprep.subr.bf16.mxu0 0
  %2662 = vmatpush1.bf16.msra.mxu0 0
  %2663 = vmatprep.subr.bf16.mxu0 0
  %2664 = vmatpush1.bf16.msra.mxu0 0
  %2665 = vmatprep.subr.bf16.mxu0 0
  %2666 = vmatpush1.bf16.msra.mxu0 0
  %2667 = vmatprep.subr.bf16.mxu0 0
  %2668 = vmatpush1.bf16.msra.mxu0 0
  %2669 = vmatprep.mubr.bf16.mxu0 0
  %2670 = vmatmul.mubr.bf16.gmra.mrb[0].mxu0 %v2582
  %v2671 = vpop.f32.mrb[0].mxu0
  %v2672 = vadd.f32 %v2587, %v2671
  %v2673 = vpop.f32.mrb[0].mxu0
  %v2674 = vpop.f32.mrb[0].mxu0
  %v2675 = vpop.f32.mrb[0].mxu0
  %2676 = vdwg.mxu0
  %v2677 = vmax.f32 %v2672, 0.0
  %v2678 = vld [vmem:[%s11] sm:$0xf]
  %v2679 = vld [vmem:[%s11 + $0x4] sm:$0xf]
  %v2680 = vld [vmem:[%s11 + $0x8] sm:$0xf]
  %v2681 = vld [vmem:[%s11 + $0xc] sm:$0xf]
  %v2682 = vld [vmem:[%s11 + $0x10] sm:$0xf]
  %v2683 = vld [vmem:[%s11 + $0x14] sm:$0xf]
  %v2684 = vld [vmem:[%s11 + $0x18] sm:$0xf]
  %v2685 = vld [vmem:[%s11 + $0x1c] sm:$0xf]
  %v2686 = vld [vmem:[%s11 + $0x20] sm:$0xf]
  %v2687 = vld [vmem:[%s11 + $0x24] sm:$0xf]
  %v2688 = vld [vmem:[%s11 + $0x28] sm:$0xf]
  %v2689 = vld [vmem:[%s11 + $0x2c] sm:$0xf]
  %v2690 = vld [vmem:[%s11 + $0x30] sm:$0xf]
  %v2691 = vld [vmem:[%s11 + $0x34] sm:$0xf]
  %v2692 = vld [vmem:[%s11 + $0x38] sm:$0xf]
  %v2693 = vld [vmem:[%s11 + $0x3c] sm:$0xf]
  %v2694 = vld [vmem:[%s12] sm:$0x1]
  %v2695 = vpack.c.bf16 %v2677, %v2677
  %v2697 = vlaneseq
  %v2698 = vshrl.u32 %v2697, 7
  %v2699 = vsub.s32 0, %v2698
  %v2700 = vrot.slane %v2694, %v2699
  %v2718 = vunpack.c.l.b16 %v2678
  %v2719 = vunpack.c.l.b16 %v2679
  %v2720 = vunpack.c.l.b16 %v2680
  %v2721 = vunpack.c.l.b16 %v2681
  %v2722 = vunpack.c.l.b16 %v2682
  %v2723 = vunpack.c.l.b16 %v2683
  %v2724 = vunpack.c.l.b16 %v2684
  %v2725 = vunpack.c.l.b16 %v2685
  %v2726 = vunpack.c.l.b16 %v2686
  %v2727 = vunpack.c.l.b16 %v2687
  %v2728 = vunpack.c.l.b16 %v2688
  %v2729 = vunpack.c.l.b16 %v2689
  %v2730 = vunpack.c.l.b16 %v2690
  %v2731 = vunpack.c.l.b16 %v2691
  %v2732 = vunpack.c.l.b16 %v2692
  %v2733 = vunpack.c.l.b16 %v2693
  %v2734 = vpack.c.b16 %v2719, %v2718
  %v2735 = vpack.c.b16 %v2721, %v2720
  %v2736 = vpack.c.b16 %v2723, %v2722
  %v2737 = vpack.c.b16 %v2725, %v2724
  %v2738 = vpack.c.b16 %v2727, %v2726
  %v2739 = vpack.c.b16 %v2729, %v2728
  %v2740 = vpack.c.b16 %v2731, %v2730
  %v2741 = vpack.c.b16 %v2733, %v2732
  %2750 = vmatprep.subr.bf16.mxu0 0
  %2751 = vmatpush1.bf16.msra.mxu0 %v2734
  %2752 = vmatprep.subr.bf16.mxu0 0
  %2753 = vmatpush1.bf16.msra.mxu0 %v2735
  %2754 = vmatprep.subr.bf16.mxu0 0
  %2755 = vmatpush1.bf16.msra.mxu0 %v2736
  %2756 = vmatprep.subr.bf16.mxu0 0
  %2757 = vmatpush1.bf16.msra.mxu0 %v2737
  %2758 = vmatprep.subr.bf16.mxu0 0
  %2759 = vmatpush1.bf16.msra.mxu0 %v2738
  %2760 = vmatprep.subr.bf16.mxu0 0
  %2761 = vmatpush1.bf16.msra.mxu0 %v2739
  %2762 = vmatprep.subr.bf16.mxu0 0
  %2763 = vmatpush1.bf16.msra.mxu0 %v2740
  %2764 = vmatprep.subr.bf16.mxu0 0
  %2765 = vmatpush1.bf16.msra.mxu0 %v2741
  %2766 = vmatprep.subr.bf16.mxu0 0
  %2767 = vmatpush1.bf16.msra.mxu0 0
  %2768 = vmatprep.subr.bf16.mxu0 0
  %2769 = vmatpush1.bf16.msra.mxu0 0
  %2770 = vmatprep.subr.bf16.mxu0 0
  %2771 = vmatpush1.bf16.msra.mxu0 0
  %2772 = vmatprep.subr.bf16.mxu0 0
  %2773 = vmatpush1.bf16.msra.mxu0 0
  %2774 = vmatprep.subr.bf16.mxu0 0
  %2775 = vmatpush1.bf16.msra.mxu0 0
  %2776 = vmatprep.subr.bf16.mxu0 0
  %2777 = vmatpush1.bf16.msra.mxu0 0
  %2778 = vmatprep.subr.bf16.mxu0 0
  %2779 = vmatpush1.bf16.msra.mxu0 0
  %2780 = vmatprep.subr.bf16.mxu0 0
  %2781 = vmatpush1.bf16.msra.mxu0 0
  %2782 = vmatprep.mubr.bf16.mxu0 0
  %2783 = vmatmul.mubr.bf16.gmra.mrb[0].mxu0 %v2695
  %v2784 = vpop.f32.mrb[0].mxu0
  %v2785 = vadd.f32 %v2700, %v2784
  %v2786 = vpop.f32.mrb[0].mxu0
  %v2787 = vpop.f32.mrb[0].mxu0
  %v2788 = vpop.f32.mrb[0].mxu0
  %2789 = vdwg.mxu0
  %v2790 = vmax.f32 %v2785, 0.0
  %v2791 = vld [vmem:[%s13] sm:$0xf]
  %v2792 = vld [vmem:[%s13 + $0x4] sm:$0xf]
  %v2793 = vld [vmem:[%s13 + $0x8] sm:$0xf]
  %v2794 = vld [vmem:[%s13 + $0xc] sm:$0xf]
  %v2795 = vld [vmem:[%s13 + $0x10] sm:$0xf]
  %v2796 = vld [vmem:[%s13 + $0x14] sm:$0xf]
  %v2797 = vld [vmem:[%s13 + $0x18] sm:$0xf]
  %v2798 = vld [vmem:[%s13 + $0x1c] sm:$0xf]
  %v2799 = vld [vmem:[%s13 + $0x20] sm:$0xf]
  %v2800 = vld [vmem:[%s13 + $0x24] sm:$0xf]
  %v2801 = vld [vmem:[%s13 + $0x28] sm:$0xf]
  %v2802 = vld [vmem:[%s13 + $0x2c] sm:$0xf]
  %v2803 = vld [vmem:[%s13 + $0x30] sm:$0xf]
  %v2804 = vld [vmem:[%s13 + $0x34] sm:$0xf]
  %v2805 = vld [vmem:[%s13 + $0x38] sm:$0xf]
  %v2806 = vld [vmem:[%s13 + $0x3c] sm:$0xf]
  %v2807 = vld [vmem:[%s14] sm:$0x1]
  %v2808 = vpack.c.bf16 %v2790, %v2790
  %v2810 = vlaneseq
  %v2811 = vshrl.u32 %v2810, 7
  %v2812 = vsub.s32 0, %v2811
  %v2813 = vrot.slane %v2807, %v2812
  %v2831 = vunpack.c.l.b16 %v2791
  %v2832 = vunpack.c.l.b16 %v2792
  %v2833 = vunpack.c.l.b16 %v2793
  %v2834 = vunpack.c.l.b16 %v2794
  %v2835 = vunpack.c.l.b16 %v2795
  %v2836 = vunpack.c.l.b16 %v2796
  %v2837 = vunpack.c.l.b16 %v2797
  %v2838 = vunpack.c.l.b16 %v2798
  %v2839 = vunpack.c.l.b16 %v2799
  %v2840 = vunpack.c.l.b16 %v2800
  %v2841 = vunpack.c.l.b16 %v2801
  %v2842 = vunpack.c.l.b16 %v2802
  %v2843 = vunpack.c.l.b16 %v2803
  %v2844 = vunpack.c.l.b16 %v2804
  %v2845 = vunpack.c.l.b16 %v2805
  %v2846 = vunpack.c.l.b16 %v2806
  %v2847 = vpack.c.b16 %v2832, %v2831
  %v2848 = vpack.c.b16 %v2834, %v2833
  %v2849 = vpack.c.b16 %v2836, %v2835
  %v2850 = vpack.c.b16 %v2838, %v2837
  %v2851 = vpack.c.b16 %v2840, %v2839
  %v2852 = vpack.c.b16 %v2842, %v2841
  %v2853 = vpack.c.b16 %v2844, %v2843
  %v2854 = vpack.c.b16 %v2846, %v2845
  %2863 = vmatprep.subr.bf16.mxu0 0
  %2864 = vmatpush1.bf16.msra.mxu0 %v2847
  %2865 = vmatprep.subr.bf16.mxu0 0
  %2866 = vmatpush1.bf16.msra.mxu0 %v2848
  %2867 = vmatprep.subr.bf16.mxu0 0
  %2868 = vmatpush1.bf16.msra.mxu0 %v2849
  %2869 = vmatprep.subr.bf16.mxu0 0
  %2870 = vmatpush1.bf16.msra.mxu0 %v2850
  %2871 = vmatprep.subr.bf16.mxu0 0
  %2872 = vmatpush1.bf16.msra.mxu0 %v2851
  %2873 = vmatprep.subr.bf16.mxu0 0
  %2874 = vmatpush1.bf16.msra.mxu0 %v2852
  %2875 = vmatprep.subr.bf16.mxu0 0
  %2876 = vmatpush1.bf16.msra.mxu0 %v2853
  %2877 = vmatprep.subr.bf16.mxu0 0
  %2878 = vmatpush1.bf16.msra.mxu0 %v2854
  %2879 = vmatprep.subr.bf16.mxu0 0
  %2880 = vmatpush1.bf16.msra.mxu0 0
  %2881 = vmatprep.subr.bf16.mxu0 0
  %2882 = vmatpush1.bf16.msra.mxu0 0
  %2883 = vmatprep.subr.bf16.mxu0 0
  %2884 = vmatpush1.bf16.msra.mxu0 0
  %2885 = vmatprep.subr.bf16.mxu0 0
  %2886 = vmatpush1.bf16.msra.mxu0 0
  %2887 = vmatprep.subr.bf16.mxu0 0
  %2888 = vmatpush1.bf16.msra.mxu0 0
  %2889 = vmatprep.subr.bf16.mxu0 0
  %2890 = vmatpush1.bf16.msra.mxu0 0
  %2891 = vmatprep.subr.bf16.mxu0 0
  %2892 = vmatpush1.bf16.msra.mxu0 0
  %2893 = vmatprep.subr.bf16.mxu0 0
  %2894 = vmatpush1.bf16.msra.mxu0 0
  %2895 = vmatprep.mubr.bf16.mxu0 0
  %2896 = vmatmul.mubr.bf16.gmra.mrb[0].mxu0 %v2808
  %v2897 = vpop.f32.mrb[0].mxu0
  %v2898 = vadd.f32 %v2813, %v2897
  %v2899 = vpop.f32.mrb[0].mxu0
  %v2900 = vpop.f32.mrb[0].mxu0
  %v2901 = vpop.f32.mrb[0].mxu0
  %2902 = vdwg.mxu0
  %v2903 = vmax.f32 %v2898, 0.0
  %v2904 = vld [vmem:[%s15] sm:$0xf]
  %v2905 = vld [vmem:[%s15 + $0x4] sm:$0xf]
  %v2906 = vld [vmem:[%s15 + $0x8] sm:$0xf]
  %v2907 = vld [vmem:[%s15 + $0xc] sm:$0xf]
  %v2908 = vld [vmem:[%s15 + $0x10] sm:$0xf]
  %v2909 = vld [vmem:[%s15 + $0x14] sm:$0xf]
  %v2910 = vld [vmem:[%s15 + $0x18] sm:$0xf]
  %v2911 = vld [vmem:[%s15 + $0x1c] sm:$0xf]
  %v2912 = vld [vmem:[%s15 + $0x20] sm:$0xf]
  %v2913 = vld [vmem:[%s15 + $0x24] sm:$0xf]
  %v2914 = vld [vmem:[%s15 + $0x28] sm:$0xf]
  %v2915 = vld [vmem:[%s15 + $0x2c] sm:$0xf]
  %v2916 = vld [vmem:[%s15 + $0x30] sm:$0xf]
  %v2917 = vld [vmem:[%s15 + $0x34] sm:$0xf]
  %v2918 = vld [vmem:[%s15 + $0x38] sm:$0xf]
  %v2919 = vld [vmem:[%s15 + $0x3c] sm:$0xf]
  %v2920 = vld [vmem:[%s16] sm:$0x1]
  %v2921 = vpack.c.bf16 %v2903, %v2903
  %v2923 = vlaneseq
  %v2924 = vshrl.u32 %v2923, 7
  %v2925 = vsub.s32 0, %v2924
  %v2926 = vrot.slane %v2920, %v2925
  %v2944 = vunpack.c.l.b16 %v2904
  %v2945 = vunpack.c.l.b16 %v2905
  %v2946 = vunpack.c.l.b16 %v2906
  %v2947 = vunpack.c.l.b16 %v2907
  %v2948 = vunpack.c.l.b16 %v2908
  %v2949 = vunpack.c.l.b16 %v2909
  %v2950 = vunpack.c.l.b16 %v2910
  %v2951 = vunpack.c.l.b16 %v2911
  %v2952 = vunpack.c.l.b16 %v2912
  %v2953 = vunpack.c.l.b16 %v2913
  %v2954 = vunpack.c.l.b16 %v2914
  %v2955 = vunpack.c.l.b16 %v2915
  %v2956 = vunpack.c.l.b16 %v2916
  %v2957 = vunpack.c.l.b16 %v2917
  %v2958 = vunpack.c.l.b16 %v2918
  %v2959 = vunpack.c.l.b16 %v2919
  %v2960 = vpack.c.b16 %v2945, %v2944
  %v2961 = vpack.c.b16 %v2947, %v2946
  %v2962 = vpack.c.b16 %v2949, %v2948
  %v2963 = vpack.c.b16 %v2951, %v2950
  %v2964 = vpack.c.b16 %v2953, %v2952
  %v2965 = vpack.c.b16 %v2955, %v2954
  %v2966 = vpack.c.b16 %v2957, %v2956
  %v2967 = vpack.c.b16 %v2959, %v2958
  %2976 = vmatprep.subr.bf16.mxu0 0
  %2977 = vmatpush1.bf16.msra.mxu0 %v2960
  %2978 = vmatprep.subr.bf16.mxu0 0
  %2979 = vmatpush1.bf16.msra.mxu0 %v2961
  %2980 = vmatprep.subr.bf16.mxu0 0
  %2981 = vmatpush1.bf16.msra.mxu0 %v2962
  %2982 = vmatprep.subr.bf16.mxu0 0
  %2983 = vmatpush1.bf16.msra.mxu0 %v2963
  %2984 = vmatprep.subr.bf16.mxu0 0
  %2985 = vmatpush1.bf16.msra.mxu0 %v2964
  %2986 = vmatprep.subr.bf16.mxu0 0
  %2987 = vmatpush1.bf16.msra.mxu0 %v2965
  %2988 = vmatprep.subr.bf16.mxu0 0
  %2989 = vmatpush1.bf16.msra.mxu0 %v2966
  %2990 = vmatprep.subr.bf16.mxu0 0
  %2991 = vmatpush1.bf16.msra.mxu0 %v2967
  %2992 = vmatprep.subr.bf16.mxu0 0
  %2993 = vmatpush1.bf16.msra.mxu0 0
  %2994 = vmatprep.subr.bf16.mxu0 0
  %2995 = vmatpush1.bf16.msra.mxu0 0
  %2996 = vmatprep.subr.bf16.mxu0 0
  %2997 = vmatpush1.bf16.msra.mxu0 0
  %2998 = vmatprep.subr.bf16.mxu0 0
  %2999 = vmatpush1.bf16.msra.mxu0 0
  %3000 = vmatprep.subr.bf16.mxu0 0
  %3001 = vmatpush1.bf16.msra.mxu0 0
  %3002 = vmatprep.subr.bf16.mxu0 0
  %3003 = vmatpush1.bf16.msra.mxu0 0
  %3004 = vmatprep.subr.bf16.mxu0 0
  %3005 = vmatpush1.bf16.msra.mxu0 0
  %3006 = vmatprep.subr.bf16.mxu0 0
  %3007 = vmatpush1.bf16.msra.mxu0 0
  %3008 = vmatprep.mubr.bf16.mxu0 0
  %3009 = vmatmul.mubr.bf16.gmra.mrb[0].mxu0 %v2921
  %v3010 = vpop.f32.mrb[0].mxu0
  %v3011 = vadd.f32 %v2926, %v3010
  %v3012 = vpop.f32.mrb[0].mxu0
  %v3013 = vpop.f32.mrb[0].mxu0
  %v3014 = vpop.f32.mrb[0].mxu0
  %3015 = vdwg.mxu0
  %v3016 = vmax.f32 %v3011, 0.0
  %v3017 = vld [vmem:[%s17] sm:$0xf]
  %v3018 = vld [vmem:[%s17 + $0x4] sm:$0xf]
  %v3019 = vld [vmem:[%s17 + $0x8] sm:$0xf]
  %v3020 = vld [vmem:[%s17 + $0xc] sm:$0xf]
  %v3021 = vld [vmem:[%s17 + $0x10] sm:$0xf]
  %v3022 = vld [vmem:[%s17 + $0x14] sm:$0xf]
  %v3023 = vld [vmem:[%s17 + $0x18] sm:$0xf]
  %v3024 = vld [vmem:[%s17 + $0x1c] sm:$0xf]
  %v3025 = vld [vmem:[%s17 + $0x20] sm:$0xf]
  %v3026 = vld [vmem:[%s17 + $0x24] sm:$0xf]
  %v3027 = vld [vmem:[%s17 + $0x28] sm:$0xf]
  %v3028 = vld [vmem:[%s17 + $0x2c] sm:$0xf]
  %v3029 = vld [vmem:[%s17 + $0x30] sm:$0xf]
  %v3030 = vld [vmem:[%s17 + $0x34] sm:$0xf]
  %v3031 = vld [vmem:[%s17 + $0x38] sm:$0xf]
  %v3032 = vld [vmem:[%s17 + $0x3c] sm:$0xf]
  %v3033 = vld [vmem:[%s18] sm:$0x1]
  %v3034 = vpack.c.bf16 %v3016, %v3016
  %v3036 = vlaneseq
  %v3037 = vshrl.u32 %v3036, 7
  %v3038 = vsub.s32 0, %v3037
  %v3039 = vrot.slane %v3033, %v3038
  %v3057 = vunpack.c.l.b16 %v3017
  %v3058 = vunpack.c.l.b16 %v3018
  %v3059 = vunpack.c.l.b16 %v3019
  %v3060 = vunpack.c.l.b16 %v3020
  %v3061 = vunpack.c.l.b16 %v3021
  %v3062 = vunpack.c.l.b16 %v3022
  %v3063 = vunpack.c.l.b16 %v3023
  %v3064 = vunpack.c.l.b16 %v3024
  %v3065 = vunpack.c.l.b16 %v3025
  %v3066 = vunpack.c.l.b16 %v3026
  %v3067 = vunpack.c.l.b16 %v3027
  %v3068 = vunpack.c.l.b16 %v3028
  %v3069 = vunpack.c.l.b16 %v3029
  %v3070 = vunpack.c.l.b16 %v3030
  %v3071 = vunpack.c.l.b16 %v3031
  %v3072 = vunpack.c.l.b16 %v3032
  %v3073 = vpack.c.b16 %v3058, %v3057
  %v3074 = vpack.c.b16 %v3060, %v3059
  %v3075 = vpack.c.b16 %v3062, %v3061
  %v3076 = vpack.c.b16 %v3064, %v3063
  %v3077 = vpack.c.b16 %v3066, %v3065
  %v3078 = vpack.c.b16 %v3068, %v3067
  %v3079 = vpack.c.b16 %v3070, %v3069
  %v3080 = vpack.c.b16 %v3072, %v3071
  %3089 = vmatprep.subr.bf16.mxu0 0
  %3090 = vmatpush1.bf16.msra.mxu0 %v3073
  %3091 = vmatprep.subr.bf16.mxu0 0
  %3092 = vmatpush1.bf16.msra.mxu0 %v3074
  %3093 = vmatprep.subr.bf16.mxu0 0
  %3094 = vmatpush1.bf16.msra.mxu0 %v3075
  %3095 = vmatprep.subr.bf16.mxu0 0
  %3096 = vmatpush1.bf16.msra.mxu0 %v3076
  %3097 = vmatprep.subr.bf16.mxu0 0
  %3098 = vmatpush1.bf16.msra.mxu0 %v3077
  %3099 = vmatprep.subr.bf16.mxu0 0
  %3100 = vmatpush1.bf16.msra.mxu0 %v3078
  %3101 = vmatprep.subr.bf16.mxu0 0
  %3102 = vmatpush1.bf16.msra.mxu0 %v3079
  %3103 = vmatprep.subr.bf16.mxu0 0
  %3104 = vmatpush1.bf16.msra.mxu0 %v3080
  %3105 = vmatprep.subr.bf16.mxu0 0
  %3106 = vmatpush1.bf16.msra.mxu0 0
  %3107 = vmatprep.subr.bf16.mxu0 0
  %3108 = vmatpush1.bf16.msra.mxu0 0
  %3109 = vmatprep.subr.bf16.mxu0 0
  %3110 = vmatpush1.bf16.msra.mxu0 0
  %3111 = vmatprep.subr.bf16.mxu0 0
  %3112 = vmatpush1.bf16.msra.mxu0 0
  %3113 = vmatprep.subr.bf16.mxu0 0
  %3114 = vmatpush1.bf16.msra.mxu0 0
  %3115 = vmatprep.subr.bf16.mxu0 0
  %3116 = vmatpush1.bf16.msra.mxu0 0
  %3117 = vmatprep.subr.bf16.mxu0 0
  %3118 = vmatpush1.bf16.msra.mxu0 0
  %3119 = vmatprep.subr.bf16.mxu0 0
  %3120 = vmatpush1.bf16.msra.mxu0 0
  %3121 = vmatprep.mubr.bf16.mxu0 0
  %3122 = vmatmul.mubr.bf16.gmra.mrb[0].mxu0 %v3034
  %v3123 = vpop.f32.mrb[0].mxu0
  %v3124 = vadd.f32 %v3039, %v3123
  %v3125 = vpop.f32.mrb[0].mxu0
  %v3126 = vpop.f32.mrb[0].mxu0
  %v3127 = vpop.f32.mrb[0].mxu0
  %3128 = vdwg.mxu0
  %v3129 = vmax.f32 %v3124, 0.0
  %3130 = vst [vmem:[%s19] sm:$0xff] %v3129
  // Predicated region
  $region78: #{mlp9l_forward.1} parent=0 // pred_check
    _
  $region79: #{mlp9l_forward.1} parent=0 // pred_check_branch
    %3132 = sbr.rel (0) target = $region81
  $region80: #{mlp9l_forward.1} parent=0 // pred_region
    _
  $region81: #{mlp9l_forward.1} parent=0 // pred_fallthru
    _
  // Predicated region
  $region82: #{mlp9l_forward.1} parent=0 // pred_check
    _
  $region83: #{mlp9l_forward.1} parent=0 // pred_check_branch
    %3134 = sbr.rel (0) target = $region85
  $region84: #{mlp9l_forward.1} parent=0 // pred_region
    _
  $region85: #{mlp9l_forward.1} parent=0 // pred_fallthru
    _

</llo_original>
